<compile_context>
chip_gen: v7x
topology: tpu7x:2x2x1
jax: 0.10.0
libtpu: 0.0.40
codegen_flags: <defaults>
</compile_context>

<pallas_src>
import numpy as np
import jax
import jax.numpy as jnp
from jax.experimental import pallas as pl
from jax.experimental.pallas import tpu as pltpu

# ---- hyperparameters -------------------------------------------------------
INIT_DIM = 8
INPUT_SIZE = 16
OUTPUT_SIZE = 6
HIDDEN_DIM = 32
N_LAYERS = 1
KSIZE = 3
NUM_LAYERS2 = 3
L1 = INPUT_SIZE - (KSIZE - 1)          # after conv1
L2 = L1 - (KSIZE - 1)                  # after conv2
LIN_IN = L2 * NUM_LAYERS2              # linear_layer_input_size


# ---- Pallas kernel ---------------------------------------------------------
def _step_seq_kernel(xflat_ref, init_ref,
                     w1_ref, b1_ref, w2_ref, b2_ref,
                     initw_ref, initb_ref,
                     wih_ref, bihh_ref,
                     whh_ref,
                     outw_ref, outb_ref,
                     out_ref, hfin_ref,
                     hall_scr):
    f32 = jnp.float32
    B = init_ref.shape[0]
    TB = xflat_ref.shape[0]
    T = TB // B

    # ---- time-parallel phase: all T*B rows at once --------------------------
    # conv1 (+ReLU) as a dense linear map (2*L -> 3*L1); column order p*3 + c.
    h1 = jnp.maximum(
        jnp.dot(xflat_ref[...], w1_ref[...], preferred_element_type=f32)
        + b1_ref[...], 0.0)
    # conv2 + channel-major flatten + input_fc folded into one (3*L1 -> 16) matrix.
    interm = jnp.dot(h1, w2_ref[...], preferred_element_type=f32) + b2_ref[...]
    # input-to-hidden projection for every step (bih + bhh pre-summed).
    xh = jnp.dot(interm, wih_ref[...], preferred_element_type=f32) + bihh_ref[...]

    # ---- initial hidden state: h0 = tanh(init @ Wi^T + bi) -------------------
    h = jnp.tanh(jnp.dot(init_ref[...], initw_ref[...],
                         preferred_element_type=f32) + initb_ref[...])

    # ---- serial tanh-RNN recurrence (the only data-dependent part) ----------
    whh = whh_ref[...]
    for t in range(T):                                  # static unroll, T small
        h = jnp.tanh(xh[t * B:(t + 1) * B, :]
                     + jnp.dot(h, whh, preferred_element_type=f32))
        hall_scr[pl.ds(t * B, B), :] = h

    # ---- batched output projection + single stores ---------------------------
    out_ref[...] = jnp.dot(hall_scr[...], outw_ref[...],
                           preferred_element_type=f32) + outb_ref[...]
    hfin_ref[...] = h


# ---- wrapper ---------------------------------------------------------------
def step_sequence_model_conv(x, init, params):
    """x: (B, T, 2, INPUT_SIZE) f32; init: (N_LAYERS=1, B, INIT_DIM) f32.
    Returns (out (B, T, OUTPUT_SIZE), hidden (1, B, HIDDEN_DIM))."""
    B, T = x.shape[0], x.shape[1]
    # Layout plumbing only: row n = t*B + b, columns = (ic, l) row-major.
    xflat = jnp.transpose(x, (1, 0, 2, 3)).reshape(T * B, 2 * INPUT_SIZE)
    xflat = xflat.astype(jnp.float32)
    init0 = init[0].astype(jnp.float32)

    args = (xflat, init0,
            params['w1full'], params['b1tiled'],
            params['w2eff'], params['b2eff'],
            params['initw_t'], params['initb'],
            params['wih_t'], params['bihh'],
            params['whh_t'],
            params['outw_t'], params['outb'])

    def full(a):  # whole array resident in VMEM, same (only) block
        return pl.BlockSpec(a.shape, lambda i, _n=a.ndim: (0,) * _n)

    grid_spec = pltpu.PrefetchScalarGridSpec(
        num_scalar_prefetch=0,
        grid=(1,),                                    # single invocation
        in_specs=[full(a) for a in args],
        out_specs=[pl.BlockSpec((T * B, OUTPUT_SIZE), lambda i: (0, 0)),
                   pl.BlockSpec((B, HIDDEN_DIM), lambda i: (0, 0))],
        scratch_shapes=[pltpu.VMEM((T * B, HIDDEN_DIM), jnp.float32)],
    )
    out_all, h_final = pl.pallas_call(
        _step_seq_kernel,
        out_shape=[jax.ShapeDtypeStruct((T * B, OUTPUT_SIZE), jnp.float32),
                   jax.ShapeDtypeStruct((B, HIDDEN_DIM), jnp.float32)],
        grid_spec=grid_spec,
        compiler_params=pltpu.CompilerParams(
            dimension_semantics=("arbitrary",)),
    )(*args)

    out = jnp.transpose(out_all.reshape(T, B, OUTPUT_SIZE), (1, 0, 2))  # (B,T,O)
    hidden = h_final[None, :, :]                                        # (1,B,H)
    return out, hidden


# ---- deterministic parameter init + offline weight folding -----------------
def make_params(key):
    ks = jax.random.split(key, 16)

    def uni(k, shape, fan_in):
        b = 1.0 / np.sqrt(fan_in)
        return jax.random.uniform(k, shape, jnp.float32, -b, b)

    raw = dict(
        initw=uni(ks[0], (HIDDEN_DIM, INIT_DIM), INIT_DIM),
        initb=uni(ks[1], (HIDDEN_DIM,), INIT_DIM),
        c1w=uni(ks[2], (3, 2, KSIZE), 2 * KSIZE),
        c1b=uni(ks[3], (3,), 2 * KSIZE),
        c2w=uni(ks[4], (NUM_LAYERS2, 3, KSIZE), 3 * KSIZE),
        c2b=uni(ks[5], (NUM_LAYERS2,), 3 * KSIZE),
        fcw=uni(ks[6], (INPUT_SIZE, LIN_IN), LIN_IN),
        fcb=uni(ks[7], (INPUT_SIZE,), LIN_IN),
        wih=uni(ks[8], (HIDDEN_DIM, INPUT_SIZE), HIDDEN_DIM),
        bih=uni(ks[9], (HIDDEN_DIM,), HIDDEN_DIM),
        whh=uni(ks[10], (HIDDEN_DIM, HIDDEN_DIM), HIDDEN_DIM),
        bhh=uni(ks[11], (HIDDEN_DIM,), HIDDEN_DIM),
        outw=uni(ks[12], (OUTPUT_SIZE, HIDDEN_DIM), HIDDEN_DIM),
        outb=uni(ks[13], (OUTPUT_SIZE,), HIDDEN_DIM),
    )

    w1 = np.asarray(raw['c1w']); b1 = np.asarray(raw['c1b'])
    w2 = np.asarray(raw['c2w']); b2 = np.asarray(raw['c2b'])
    fcw = np.asarray(raw['fcw']); fcb = np.asarray(raw['fcb'])

    # conv1 as dense linear map: input col = ic*L + l; output col = p*3 + c.
    w1full = np.zeros((2 * INPUT_SIZE, 3 * L1), np.float32)
    b1tiled = np.zeros((3 * L1,), np.float32)
    for c in range(3):
        for p in range(L1):
            col = p * 3 + c
            b1tiled[col] = b1[c]
            for ic in range(2):
                for k in range(KSIZE):
                    w1full[ic * INPUT_SIZE + p + k, col] = w1[c, ic, k]

    # conv2 + channel-major flatten (.view) + input_fc composed exactly:
    # interm[j] = b2eff[j] + sum_{c,p} w2eff[p*3+c, j] * relu_out1[c, p]
    w2eff = np.zeros((3 * L1, INPUT_SIZE), np.float32)
    for c in range(3):
        for p in range(L1):
            col = p * 3 + c
            for oc2 in range(NUM_LAYERS2):
                for k in range(KSIZE):
                    q = p - k
                    if 0 <= q < L2:
                        w2eff[col, :] += fcw[:, oc2 * L2 + q] * w2[oc2, c, k]
    b2eff = fcb.copy()
    for oc2 in range(NUM_LAYERS2):
        b2eff += b2[oc2] * fcw[:, oc2 * L2:(oc2 + 1) * L2].sum(axis=1)

    kernel_params = dict(
        w1full=jnp.asarray(w1full), b1tiled=jnp.asarray(b1tiled)[None, :],
        w2eff=jnp.asarray(w2eff), b2eff=jnp.asarray(b2eff)[None, :],
        initw_t=jnp.asarray(raw['initw']).T, initb=jnp.asarray(raw['initb'])[None, :],
        wih_t=jnp.asarray(raw['wih']).T,
        bihh=(jnp.asarray(raw['bih']) + jnp.asarray(raw['bhh']))[None, :],
        whh_t=jnp.asarray(raw['whh']).T,
        outw_t=jnp.asarray(raw['outw']).T, outb=jnp.asarray(raw['outb'])[None, :],
    )
    return raw, kernel_params


# ---- numpy reference (mirrors the PyTorch forward) --------------------------
def reference_forward(x, init, p):
    B, T = x.shape[0], x.shape[1]

    def conv1d(xx, w, b):
        Bn, Cin, L = xx.shape
        Cout, _, K = w.shape
        Lout = L - K + 1
        out = np.zeros((Bn, Cout, Lout), np.float32)
        for oc in range(Cout):
            out[:, oc, :] = b[oc]
            for ic in range(Cin):
                for k in range(K):
                    out[:, oc, :] += w[oc, ic, k] * xx[:, ic, k:k + Lout]
        return out

    h0 = np.tanh(init @ np.asarray(p['initw']).T + np.asarray(p['initb']))  # (1,B,H)
    rnn_in = np.zeros((B, T, INPUT_SIZE), np.float32)
    for i in range(T):
        h1 = np.maximum(conv1d(x[:, i], np.asarray(p['c1w']), np.asarray(p['c1b'])), 0.0)
        h2 = conv1d(h1, np.asarray(p['c2w']), np.asarray(p['c2b']))
        flat = h2.reshape(B, -1)
        rnn_in[:, i] = flat @ np.asarray(p['fcw']).T + np.asarray(p['fcb'])

    h = h0[0]
    outs = np.zeros((B, T, HIDDEN_DIM), np.float32)
    for t in range(T):
        h = np.tanh(rnn_in[:, t] @ np.asarray(p['wih']).T + np.asarray(p['bih'])
                    + h @ np.asarray(p['whh']).T + np.asarray(p['bhh']))
        outs[:, t] = h
    out = outs @ np.asarray(p['outw']).T + np.asarray(p['outb'])
    return out.astype(np.float32), h[None].astype(np.float32)


# ---- main -------------------------------------------------------------------
if __name__ == "__main__":
    key = jax.random.PRNGKey(0)
    kx, ki, kp = jax.random.split(key, 3)
    B, T = 2, 8
    x = jax.random.normal(kx, (B, T, 2, INPUT_SIZE), jnp.float32)
    init = jax.random.normal(ki, (N_LAYERS, B, INIT_DIM), jnp.float32)
    raw, params = make_params(kp)

    out, hidden = step_sequence_model_conv(x, init, params)
    out = jax.block_until_ready(out)
    hidden = jax.block_until_ready(hidden)

    ref_out, ref_hidden = reference_forward(np.asarray(x), np.asarray(init), raw)
    # Default (fast) MXU precision is used in-kernel -> slightly looser tolerance.
    np.testing.assert_allclose(np.asarray(out), ref_out, rtol=2e-2, atol=2e-2)
    np.testing.assert_allclose(np.asarray(hidden), ref_hidden, rtol=2e-2, atol=2e-2)
    print("KERNEL_OK")
</pallas_src>

<mosaic_0001>
module attributes {stable_mosaic.version = 11 : i64} {
  func.func @_step_seq_kernel(%arg0: i32, %arg1: memref<16x32xf32, #tpu.memory_space<vmem>>, %arg2: memref<2x8xf32, #tpu.memory_space<vmem>>, %arg3: memref<32x42xf32, #tpu.memory_space<vmem>>, %arg4: memref<1x42xf32, #tpu.memory_space<vmem>>, %arg5: memref<42x16xf32, #tpu.memory_space<vmem>>, %arg6: memref<1x16xf32, #tpu.memory_space<vmem>>, %arg7: memref<8x32xf32, #tpu.memory_space<vmem>>, %arg8: memref<1x32xf32, #tpu.memory_space<vmem>>, %arg9: memref<16x32xf32, #tpu.memory_space<vmem>>, %arg10: memref<1x32xf32, #tpu.memory_space<vmem>>, %arg11: memref<32x32xf32, #tpu.memory_space<vmem>>, %arg12: memref<32x6xf32, #tpu.memory_space<vmem>>, %arg13: memref<1x6xf32, #tpu.memory_space<vmem>>, %arg14: memref<16x6xf32, #tpu.memory_space<vmem>>, %arg15: memref<2x32xf32, #tpu.memory_space<vmem>>, %arg16: memref<16x32xf32, #tpu.memory_space<vmem>>) attributes {dimension_semantics = [#tpu.dimension_semantics<arbitrary>], iteration_bounds = array<i64: 1>, scalar_prefetch = 0 : i64, scratch_operands = 1 : i64, tpu.core_type = #tpu.core_type<tc>, window_params = [{pipeline_mode = #tpu.pipeline_mode<synchronous>, transform_indices = @transform_0, window_bounds = array<i64: 16, 32>}, {pipeline_mode = #tpu.pipeline_mode<synchronous>, transform_indices = @transform_1, window_bounds = array<i64: 2, 8>}, {pipeline_mode = #tpu.pipeline_mode<synchronous>, transform_indices = @transform_2, window_bounds = array<i64: 32, 42>}, {pipeline_mode = #tpu.pipeline_mode<synchronous>, transform_indices = @transform_3, window_bounds = array<i64: 1, 42>}, {pipeline_mode = #tpu.pipeline_mode<synchronous>, transform_indices = @transform_4, window_bounds = array<i64: 42, 16>}, {pipeline_mode = #tpu.pipeline_mode<synchronous>, transform_indices = @transform_5, window_bounds = array<i64: 1, 16>}, {pipeline_mode = #tpu.pipeline_mode<synchronous>, transform_indices = @transform_6, window_bounds = array<i64: 8, 32>}, {pipeline_mode = #tpu.pipeline_mode<synchronous>, transform_indices = @transform_7, window_bounds = array<i64: 1, 32>}, {pipeline_mode = #tpu.pipeline_mode<synchronous>, transform_indices = @transform_8, window_bounds = array<i64: 16, 32>}, {pipeline_mode = #tpu.pipeline_mode<synchronous>, transform_indices = @transform_9, window_bounds = array<i64: 1, 32>}, {pipeline_mode = #tpu.pipeline_mode<synchronous>, transform_indices = @transform_10, window_bounds = array<i64: 32, 32>}, {pipeline_mode = #tpu.pipeline_mode<synchronous>, transform_indices = @transform_11, window_bounds = array<i64: 32, 6>}, {pipeline_mode = #tpu.pipeline_mode<synchronous>, transform_indices = @transform_12, window_bounds = array<i64: 1, 6>}, {pipeline_mode = #tpu.pipeline_mode<synchronous>, transform_indices = @transform_13, window_bounds = array<i64: 16, 6>}, {pipeline_mode = #tpu.pipeline_mode<synchronous>, transform_indices = @transform_14, window_bounds = array<i64: 2, 32>}]} {
    %c0 = arith.constant 0 : index
    %c0_0 = arith.constant 0 : index
    %0 = vector.load %arg1[%c0, %c0_0] : memref<16x32xf32, #tpu.memory_space<vmem>>, vector<16x32xf32>
    %c0_1 = arith.constant 0 : index
    %c0_2 = arith.constant 0 : index
    %1 = vector.load %arg3[%c0_1, %c0_2] : memref<32x42xf32, #tpu.memory_space<vmem>>, vector<32x42xf32>
    %cst = arith.constant dense<0.000000e+00> : vector<16x42xf32>
    %2 = tpu.matmul %0, %1, %cst {dimension_numbers = #tpu.dot_dimension_numbers<[1], [0], [0], [1], [0, 0, 1, 1], [], []>} : vector<16x32xf32>, vector<32x42xf32>, vector<16x42xf32> -> vector<16x42xf32>
    %c0_3 = arith.constant 0 : index
    %c0_4 = arith.constant 0 : index
    %3 = vector.load %arg4[%c0_3, %c0_4] : memref<1x42xf32, #tpu.memory_space<vmem>>, vector<1x42xf32>
    %4 = vector.broadcast %3 : vector<1x42xf32> to vector<16x42xf32>
    %5 = arith.addf %2, %4 : vector<16x42xf32>
    %cst_5 = arith.constant 0.000000e+00 : f32
    %6 = vector.broadcast %cst_5 : f32 to vector<16x42xf32>
    %7 = arith.maximumf %5, %6 : vector<16x42xf32>
    %c0_6 = arith.constant 0 : index
    %c0_7 = arith.constant 0 : index
    %8 = vector.load %arg5[%c0_6, %c0_7] : memref<42x16xf32, #tpu.memory_space<vmem>>, vector<42x16xf32>
    %cst_8 = arith.constant dense<0.000000e+00> : vector<16x16xf32>
    %9 = tpu.matmul %7, %8, %cst_8 {dimension_numbers = #tpu.dot_dimension_numbers<[1], [0], [0], [1], [0, 0, 1, 1], [], []>} : vector<16x42xf32>, vector<42x16xf32>, vector<16x16xf32> -> vector<16x16xf32>
    %c0_9 = arith.constant 0 : index
    %c0_10 = arith.constant 0 : index
    %10 = vector.load %arg6[%c0_9, %c0_10] : memref<1x16xf32, #tpu.memory_space<vmem>>, vector<1x16xf32>
    %11 = vector.broadcast %10 : vector<1x16xf32> to vector<16x16xf32>
    %12 = arith.addf %9, %11 : vector<16x16xf32>
    %c0_11 = arith.constant 0 : index
    %c0_12 = arith.constant 0 : index
    %13 = vector.load %arg9[%c0_11, %c0_12] : memref<16x32xf32, #tpu.memory_space<vmem>>, vector<16x32xf32>
    %cst_13 = arith.constant dense<0.000000e+00> : vector<16x32xf32>
    %14 = tpu.matmul %12, %13, %cst_13 {dimension_numbers = #tpu.dot_dimension_numbers<[1], [0], [0], [1], [0, 0, 1, 1], [], []>} : vector<16x16xf32>, vector<16x32xf32>, vector<16x32xf32> -> vector<16x32xf32>
    %c0_14 = arith.constant 0 : index
    %c0_15 = arith.constant 0 : index
    %15 = vector.load %arg10[%c0_14, %c0_15] : memref<1x32xf32, #tpu.memory_space<vmem>>, vector<1x32xf32>
    %16 = vector.broadcast %15 : vector<1x32xf32> to vector<16x32xf32>
    %17 = arith.addf %14, %16 : vector<16x32xf32>
    %c0_16 = arith.constant 0 : index
    %c0_17 = arith.constant 0 : index
    %18 = vector.load %arg2[%c0_16, %c0_17] : memref<2x8xf32, #tpu.memory_space<vmem>>, vector<2x8xf32>
    %c0_18 = arith.constant 0 : index
    %c0_19 = arith.constant 0 : index
    %19 = vector.load %arg7[%c0_18, %c0_19] : memref<8x32xf32, #tpu.memory_space<vmem>>, vector<8x32xf32>
    %cst_20 = arith.constant dense<0.000000e+00> : vector<2x32xf32>
    %20 = tpu.matmul %18, %19, %cst_20 {dimension_numbers = #tpu.dot_dimension_numbers<[1], [0], [0], [1], [0, 0, 1, 1], [], []>} : vector<2x8xf32>, vector<8x32xf32>, vector<2x32xf32> -> vector<2x32xf32>
    %c0_21 = arith.constant 0 : index
    %c0_22 = arith.constant 0 : index
    %21 = vector.load %arg8[%c0_21, %c0_22] : memref<1x32xf32, #tpu.memory_space<vmem>>, vector<1x32xf32>
    %22 = vector.broadcast %21 : vector<1x32xf32> to vector<2x32xf32>
    %23 = arith.addf %20, %22 : vector<2x32xf32>
    %24 = math.tanh %23 : vector<2x32xf32>
    %c0_23 = arith.constant 0 : index
    %c0_24 = arith.constant 0 : index
    %25 = vector.load %arg11[%c0_23, %c0_24] : memref<32x32xf32, #tpu.memory_space<vmem>>, vector<32x32xf32>
    %26 = vector.extract_strided_slice %17 {offsets = [0, 0], sizes = [2, 32], strides = [1, 1]} : vector<16x32xf32> to vector<2x32xf32>
    %cst_25 = arith.constant dense<0.000000e+00> : vector<2x32xf32>
    %27 = tpu.matmul %24, %25, %cst_25 {dimension_numbers = #tpu.dot_dimension_numbers<[1], [0], [0], [1], [0, 0, 1, 1], [], []>} : vector<2x32xf32>, vector<32x32xf32>, vector<2x32xf32> -> vector<2x32xf32>
    %28 = arith.addf %26, %27 : vector<2x32xf32>
    %29 = math.tanh %28 : vector<2x32xf32>
    %c0_26 = arith.constant 0 : index
    %c0_27 = arith.constant 0 : index
    %30 = vector.load %arg16[%c0_26, %c0_27] : memref<16x32xf32, #tpu.memory_space<vmem>>, vector<2x32xf32>
    tpu.vector_store %arg16[%c0_26, %c0_27], %29 {strides = array<i32>} : memref<16x32xf32, #tpu.memory_space<vmem>>, vector<2x32xf32>,
    %31 = vector.extract_strided_slice %17 {offsets = [2, 0], sizes = [2, 32], strides = [1, 1]} : vector<16x32xf32> to vector<2x32xf32>
    %cst_28 = arith.constant dense<0.000000e+00> : vector<2x32xf32>
    %32 = tpu.matmul %29, %25, %cst_28 {dimension_numbers = #tpu.dot_dimension_numbers<[1], [0], [0], [1], [0, 0, 1, 1], [], []>} : vector<2x32xf32>, vector<32x32xf32>, vector<2x32xf32> -> vector<2x32xf32>
    %33 = arith.addf %31, %32 : vector<2x32xf32>
    %34 = math.tanh %33 : vector<2x32xf32>
    %c2 = arith.constant 2 : index
    %c0_29 = arith.constant 0 : index
    %35 = vector.load %arg16[%c2, %c0_29] : memref<16x32xf32, #tpu.memory_space<vmem>>, vector<2x32xf32>
    tpu.vector_store %arg16[%c2, %c0_29], %34 {strides = array<i32>} : memref<16x32xf32, #tpu.memory_space<vmem>>, vector<2x32xf32>,
    %36 = vector.extract_strided_slice %17 {offsets = [4, 0], sizes = [2, 32], strides = [1, 1]} : vector<16x32xf32> to vector<2x32xf32>
    %cst_30 = arith.constant dense<0.000000e+00> : vector<2x32xf32>
    %37 = tpu.matmul %34, %25, %cst_30 {dimension_numbers = #tpu.dot_dimension_numbers<[1], [0], [0], [1], [0, 0, 1, 1], [], []>} : vector<2x32xf32>, vector<32x32xf32>, vector<2x32xf32> -> vector<2x32xf32>
    %38 = arith.addf %36, %37 : vector<2x32xf32>
    %39 = math.tanh %38 : vector<2x32xf32>
    %c4 = arith.constant 4 : index
    %c0_31 = arith.constant 0 : index
    %40 = vector.load %arg16[%c4, %c0_31] : memref<16x32xf32, #tpu.memory_space<vmem>>, vector<2x32xf32>
    tpu.vector_store %arg16[%c4, %c0_31], %39 {strides = array<i32>} : memref<16x32xf32, #tpu.memory_space<vmem>>, vector<2x32xf32>,
    %41 = vector.extract_strided_slice %17 {offsets = [6, 0], sizes = [2, 32], strides = [1, 1]} : vector<16x32xf32> to vector<2x32xf32>
    %cst_32 = arith.constant dense<0.000000e+00> : vector<2x32xf32>
    %42 = tpu.matmul %39, %25, %cst_32 {dimension_numbers = #tpu.dot_dimension_numbers<[1], [0], [0], [1], [0, 0, 1, 1], [], []>} : vector<2x32xf32>, vector<32x32xf32>, vector<2x32xf32> -> vector<2x32xf32>
    %43 = arith.addf %41, %42 : vector<2x32xf32>
    %44 = math.tanh %43 : vector<2x32xf32>
    %c6 = arith.constant 6 : index
    %c0_33 = arith.constant 0 : index
    %45 = vector.load %arg16[%c6, %c0_33] : memref<16x32xf32, #tpu.memory_space<vmem>>, vector<2x32xf32>
    tpu.vector_store %arg16[%c6, %c0_33], %44 {strides = array<i32>} : memref<16x32xf32, #tpu.memory_space<vmem>>, vector<2x32xf32>,
    %46 = vector.extract_strided_slice %17 {offsets = [8, 0], sizes = [2, 32], strides = [1, 1]} : vector<16x32xf32> to vector<2x32xf32>
    %cst_34 = arith.constant dense<0.000000e+00> : vector<2x32xf32>
    %47 = tpu.matmul %44, %25, %cst_34 {dimension_numbers = #tpu.dot_dimension_numbers<[1], [0], [0], [1], [0, 0, 1, 1], [], []>} : vector<2x32xf32>, vector<32x32xf32>, vector<2x32xf32> -> vector<2x32xf32>
    %48 = arith.addf %46, %47 : vector<2x32xf32>
    %49 = math.tanh %48 : vector<2x32xf32>
    %c8 = arith.constant 8 : index
    %c0_35 = arith.constant 0 : index
    %50 = vector.load %arg16[%c8, %c0_35] : memref<16x32xf32, #tpu.memory_space<vmem>>, vector<2x32xf32>
    tpu.vector_store %arg16[%c8, %c0_35], %49 {strides = array<i32>} : memref<16x32xf32, #tpu.memory_space<vmem>>, vector<2x32xf32>,
    %51 = vector.extract_strided_slice %17 {offsets = [10, 0], sizes = [2, 32], strides = [1, 1]} : vector<16x32xf32> to vector<2x32xf32>
    %cst_36 = arith.constant dense<0.000000e+00> : vector<2x32xf32>
    %52 = tpu.matmul %49, %25, %cst_36 {dimension_numbers = #tpu.dot_dimension_numbers<[1], [0], [0], [1], [0, 0, 1, 1], [], []>} : vector<2x32xf32>, vector<32x32xf32>, vector<2x32xf32> -> vector<2x32xf32>
    %53 = arith.addf %51, %52 : vector<2x32xf32>
    %54 = math.tanh %53 : vector<2x32xf32>
    %c10 = arith.constant 10 : index
    %c0_37 = arith.constant 0 : index
    %55 = vector.load %arg16[%c10, %c0_37] : memref<16x32xf32, #tpu.memory_space<vmem>>, vector<2x32xf32>
    tpu.vector_store %arg16[%c10, %c0_37], %54 {strides = array<i32>} : memref<16x32xf32, #tpu.memory_space<vmem>>, vector<2x32xf32>,
    %56 = vector.extract_strided_slice %17 {offsets = [12, 0], sizes = [2, 32], strides = [1, 1]} : vector<16x32xf32> to vector<2x32xf32>
    %cst_38 = arith.constant dense<0.000000e+00> : vector<2x32xf32>
    %57 = tpu.matmul %54, %25, %cst_38 {dimension_numbers = #tpu.dot_dimension_numbers<[1], [0], [0], [1], [0, 0, 1, 1], [], []>} : vector<2x32xf32>, vector<32x32xf32>, vector<2x32xf32> -> vector<2x32xf32>
    %58 = arith.addf %56, %57 : vector<2x32xf32>
    %59 = math.tanh %58 : vector<2x32xf32>
    %c12 = arith.constant 12 : index
    %c0_39 = arith.constant 0 : index
    %60 = vector.load %arg16[%c12, %c0_39] : memref<16x32xf32, #tpu.memory_space<vmem>>, vector<2x32xf32>
    tpu.vector_store %arg16[%c12, %c0_39], %59 {strides = array<i32>} : memref<16x32xf32, #tpu.memory_space<vmem>>, vector<2x32xf32>,
    %61 = vector.extract_strided_slice %17 {offsets = [14, 0], sizes = [2, 32], strides = [1, 1]} : vector<16x32xf32> to vector<2x32xf32>
    %cst_40 = arith.constant dense<0.000000e+00> : vector<2x32xf32>
    %62 = tpu.matmul %59, %25, %cst_40 {dimension_numbers = #tpu.dot_dimension_numbers<[1], [0], [0], [1], [0, 0, 1, 1], [], []>} : vector<2x32xf32>, vector<32x32xf32>, vector<2x32xf32> -> vector<2x32xf32>
    %63 = arith.addf %61, %62 : vector<2x32xf32>
    %64 = math.tanh %63 : vector<2x32xf32>
    %c14 = arith.constant 14 : index
    %c0_41 = arith.constant 0 : index
    %65 = vector.load %arg16[%c14, %c0_41] : memref<16x32xf32, #tpu.memory_space<vmem>>, vector<2x32xf32>
    tpu.vector_store %arg16[%c14, %c0_41], %64 {strides = array<i32>} : memref<16x32xf32, #tpu.memory_space<vmem>>, vector<2x32xf32>,
    %c0_42 = arith.constant 0 : index
    %c0_43 = arith.constant 0 : index
    %66 = vector.load %arg16[%c0_42, %c0_43] : memref<16x32xf32, #tpu.memory_space<vmem>>, vector<16x32xf32>
    %c0_44 = arith.constant 0 : index
    %c0_45 = arith.constant 0 : index
    %67 = vector.load %arg12[%c0_44, %c0_45] : memref<32x6xf32, #tpu.memory_space<vmem>>, vector<32x6xf32>
    %cst_46 = arith.constant dense<0.000000e+00> : vector<16x6xf32>
    %68 = tpu.matmul %66, %67, %cst_46 {dimension_numbers = #tpu.dot_dimension_numbers<[1], [0], [0], [1], [0, 0, 1, 1], [], []>} : vector<16x32xf32>, vector<32x6xf32>, vector<16x6xf32> -> vector<16x6xf32>
    %c0_47 = arith.constant 0 : index
    %c0_48 = arith.constant 0 : index
    %69 = vector.load %arg13[%c0_47, %c0_48] : memref<1x6xf32, #tpu.memory_space<vmem>>, vector<1x6xf32>
    %70 = vector.broadcast %69 : vector<1x6xf32> to vector<16x6xf32>
    %71 = arith.addf %68, %70 : vector<16x6xf32>
    %c0_49 = arith.constant 0 : index
    %c0_50 = arith.constant 0 : index
    %72 = vector.load %arg14[%c0_49, %c0_50] : memref<16x6xf32, #tpu.memory_space<vmem>>, vector<16x6xf32>
    tpu.vector_store %arg14[%c0_49, %c0_50], %71 {strides = array<i32>} : memref<16x6xf32, #tpu.memory_space<vmem>>, vector<16x6xf32>,
    %c0_51 = arith.constant 0 : index
    %c0_52 = arith.constant 0 : index
    %73 = vector.load %arg15[%c0_51, %c0_52] : memref<2x32xf32, #tpu.memory_space<vmem>>, vector<2x32xf32>
    tpu.vector_store %arg15[%c0_51, %c0_52], %64 {strides = array<i32>} : memref<2x32xf32, #tpu.memory_space<vmem>>, vector<2x32xf32>,
    return
  }
  func.func @transform_0(%arg0: i32) -> (i32, i32) {
    %c0_i32 = arith.constant 0 : i32
    %c0_i32_0 = arith.constant 0 : i32
    %c0_i32_1 = arith.constant 0 : i32
    return %c0_i32, %c0_i32_0 : i32, i32
  }
  func.func @transform_1(%arg0: i32) -> (i32, i32) {
    %c0_i32 = arith.constant 0 : i32
    %c0_i32_0 = arith.constant 0 : i32
    %c0_i32_1 = arith.constant 0 : i32
    return %c0_i32, %c0_i32_0 : i32, i32
  }
  func.func @transform_2(%arg0: i32) -> (i32, i32) {
    %c0_i32 = arith.constant 0 : i32
    %c0_i32_0 = arith.constant 0 : i32
    %c0_i32_1 = arith.constant 0 : i32
    return %c0_i32, %c0_i32_0 : i32, i32
  }
  func.func @transform_3(%arg0: i32) -> (i32, i32) {
    %c0_i32 = arith.constant 0 : i32
    %c0_i32_0 = arith.constant 0 : i32
    %c0_i32_1 = arith.constant 0 : i32
    return %c0_i32, %c0_i32_0 : i32, i32
  }
  func.func @transform_4(%arg0: i32) -> (i32, i32) {
    %c0_i32 = arith.constant 0 : i32
    %c0_i32_0 = arith.constant 0 : i32
    %c0_i32_1 = arith.constant 0 : i32
    return %c0_i32, %c0_i32_0 : i32, i32
  }
  func.func @transform_5(%arg0: i32) -> (i32, i32) {
    %c0_i32 = arith.constant 0 : i32
    %c0_i32_0 = arith.constant 0 : i32
    %c0_i32_1 = arith.constant 0 : i32
    return %c0_i32, %c0_i32_0 : i32, i32
  }
  func.func @transform_6(%arg0: i32) -> (i32, i32) {
    %c0_i32 = arith.constant 0 : i32
    %c0_i32_0 = arith.constant 0 : i32
    %c0_i32_1 = arith.constant 0 : i32
    return %c0_i32, %c0_i32_0 : i32, i32
  }
  func.func @transform_7(%arg0: i32) -> (i32, i32) {
    %c0_i32 = arith.constant 0 : i32
    %c0_i32_0 = arith.constant 0 : i32
    %c0_i32_1 = arith.constant 0 : i32
    return %c0_i32, %c0_i32_0 : i32, i32
  }
  func.func @transform_8(%arg0: i32) -> (i32, i32) {
    %c0_i32 = arith.constant 0 : i32
    %c0_i32_0 = arith.constant 0 : i32
    %c0_i32_1 = arith.constant 0 : i32
    return %c0_i32, %c0_i32_0 : i32, i32
  }
  func.func @transform_9(%arg0: i32) -> (i32, i32) {
    %c0_i32 = arith.constant 0 : i32
    %c0_i32_0 = arith.constant 0 : i32
    %c0_i32_1 = arith.constant 0 : i32
    return %c0_i32, %c0_i32_0 : i32, i32
  }
  func.func @transform_10(%arg0: i32) -> (i32, i32) {
    %c0_i32 = arith.constant 0 : i32
    %c0_i32_0 = arith.constant 0 : i32
    %c0_i32_1 = arith.constant 0 : i32
    return %c0_i32, %c0_i32_0 : i32, i32
  }
  func.func @transform_11(%arg0: i32) -> (i32, i32) {
    %c0_i32 = arith.constant 0 : i32
    %c0_i32_0 = arith.constant 0 : i32
    %c0_i32_1 = arith.constant 0 : i32
    return %c0_i32, %c0_i32_0 : i32, i32
  }
  func.func @transform_12(%arg0: i32) -> (i32, i32) {
    %c0_i32 = arith.constant 0 : i32
    %c0_i32_0 = arith.constant 0 : i32
    %c0_i32_1 = arith.constant 0 : i32
    return %c0_i32, %c0_i32_0 : i32, i32
  }
  func.func @transform_13(%arg0: i32) -> (i32, i32) {
    %c0_i32 = arith.constant 0 : i32
    %c0_i32_0 = arith.constant 0 : i32
    %c0_i32_1 = arith.constant 0 : i32
    return %c0_i32, %c0_i32_0 : i32, i32
  }
  func.func @transform_14(%arg0: i32) -> (i32, i32) {
    %c0_i32 = arith.constant 0 : i32
    %c0_i32_0 = arith.constant 0 : i32
    %c0_i32_1 = arith.constant 0 : i32
    return %c0_i32, %c0_i32_0 : i32, i32
  }
}

</mosaic_0001>

<llo_original>
// kernel: tpu_custom_call.1
$region0: #{tpu_custom_call.1}
  #allocation0 [shape = 'u32[]', space=smem, size = 0x4, offset = 0x4, fixed_abs, tag = 'smem constant byte address 0x4 - core index']
  #allocation1 [shape = 'u32[144,128]{1,0:T(1,128)}', space=vmem, size = 0x12000, scoped, tag = 'internal scratch']
  #allocation2 [shape = 'f32[16,32]{1,0:T(8,128)}', space=vmem, size = 0x2000, scoped, tag = 'scratch operand']
  %s0 = inlined_call_operand.vmem [shape: f32[16,32], index: 0, kind: input, shape index: {}]
  %s1 = inlined_call_operand.vmem [shape: f32[2,8], index: 1, kind: input, shape index: {}]
  %s2 = inlined_call_operand.vmem [shape: f32[32,42], index: 2, kind: input, shape index: {}]
  %s3 = inlined_call_operand.hbm [shape: f32[1,42], index: 3, kind: input, shape index: {}]
  %s4 = inlined_call_operand.vmem [shape: f32[42,16], index: 4, kind: input, shape index: {}]
  %s5 = inlined_call_operand.hbm [shape: f32[1,16], index: 5, kind: input, shape index: {}]
  %s6 = inlined_call_operand.hbm [shape: f32[8,32], index: 6, kind: input, shape index: {}]
  %s7 = inlined_call_operand.vmem [shape: f32[1,32], index: 7, kind: input, shape index: {}]
  %s8 = inlined_call_operand.vmem [shape: f32[16,32], index: 8, kind: input, shape index: {}]
  %s9 = inlined_call_operand.vmem [shape: f32[1,32], index: 9, kind: input, shape index: {}]
  %s10 = inlined_call_operand.vmem [shape: f32[32,32], index: 10, kind: input, shape index: {}]
  %s11 = inlined_call_operand.vmem [shape: f32[32,6], index: 11, kind: input, shape index: {}]
  %s12 = inlined_call_operand.vmem [shape: f32[1,6], index: 12, kind: input, shape index: {}]
  %s13 = inlined_call_operand.vmem [shape: f32[16,6], index: 13, kind: output, shape index: {0}]
  %s14 = inlined_call_operand.hbm [shape: f32[2,32], index: 14, kind: output, shape index: {1}]
  %15 = xla_tuple %s13, %s14
  %s16 = sld [smem:[#allocation0]]
  $region82: #{tpu_custom_call.1} parent=0
    _
  %s18 = ssub.s32 1, %s16
  %s19 = scalar_select 0, %s18, %s16
  $region1: #{tpu_custom_call.1} parent=0
    #allocation3 [shape = 'u8[512]{0}', space=vmem, size = 0x400, scoped, tag = 'input window, operand 3, single buffered']
    #allocation4 [shape = 's32[1]{0}', space=sflag, size = 0x4, scoped, tag = 'scoped memory for tpu_custom_call.1']
    #allocation5 [shape = 's32[1]{0}', space=sflag, size = 0x4, scoped, tag = 'scoped memory for tpu_custom_call.1']
    #allocation6 [shape = 'u8[512]{0}', space=vmem, size = 0x400, scoped, tag = 'input window, operand 5, single buffered']
    #allocation7 [shape = 's32[1]{0}', space=sflag, size = 0x4, scoped, tag = 'scoped memory for tpu_custom_call.1']
    #allocation8 [shape = 'u8[4096]{0}', space=vmem, size = 0x1000, scoped, tag = 'input window, operand 6, single buffered']
    #allocation9 [shape = 'u8[1024]{0}', space=vmem, size = 0x400, scoped, tag = 'output window, operand 1, single buffered']
    %20 = vsyncpa [#allocation4], 0
    %21 = vsyncpa [#allocation7], 0
    %22 = vsyncpa [#allocation5], 0
    // Predicated region
    $region2: #{tpu_custom_call.1} parent=1 // pred_check
      _
    $region3: #{tpu_custom_call.1} parent=1 // pred_check_branch
      %24 = sbr.rel (0) target = $region5
    $region4: #{tpu_custom_call.1} parent=1 // pred_region
      _
    $region5: #{tpu_custom_call.1} parent=1 // pred_fallthru
      _
    // Predicated region
    $region6: #{tpu_custom_call.1} parent=1 // pred_check
      _
    $region7: #{tpu_custom_call.1} parent=1 // pred_check_branch
      %26 = sbr.rel (0) target = $region9
    $region8: #{tpu_custom_call.1} parent=1 // pred_region
      _
    $region9: #{tpu_custom_call.1} parent=1 // pred_fallthru
      _
    // Predicated region
    $region10: #{tpu_custom_call.1} parent=1 // pred_check
      _
    $region11: #{tpu_custom_call.1} parent=1 // pred_check_branch
      %28 = sbr.rel (0) target = $region13
    $region12: #{tpu_custom_call.1} parent=1 // pred_region
      _
    $region13: #{tpu_custom_call.1} parent=1 // pred_fallthru
      _
    // Predicated region
    $region14: #{tpu_custom_call.1} parent=1 // pred_check
      _
    $region15: #{tpu_custom_call.1} parent=1 // pred_check_branch
      %30 = sbr.rel (0) target = $region17
    $region16: #{tpu_custom_call.1} parent=1 // pred_region
      %s32 = ssub.s32 16, 16
      %33 = vsyncadd [#allocation4], %s32
      %s35 = sshll.u32 [#allocation3], 4
      %s36 = int_to_ptr.vmem [resolvable:$true] %s35
      %38 = dma.hbm_to_vmem [thread:$0]  %s3, 16, %s36, [#allocation4]
    $region17: #{tpu_custom_call.1} parent=1 // pred_fallthru
      _
    // Predicated region
    $region18: #{tpu_custom_call.1} parent=1 // pred_check
      _
    $region19: #{tpu_custom_call.1} parent=1 // pred_check_branch
      %40 = sbr.rel (0) target = $region21
    $region20: #{tpu_custom_call.1} parent=1 // pred_region
      _
    $region21: #{tpu_custom_call.1} parent=1 // pred_fallthru
      _
    // Predicated region
    $region22: #{tpu_custom_call.1} parent=1 // pred_check
      _
    $region23: #{tpu_custom_call.1} parent=1 // pred_check_branch
      %42 = sbr.rel (0) target = $region25
    $region24: #{tpu_custom_call.1} parent=1 // pred_region
      %s44 = ssub.s32 16, 16
      %45 = vsyncadd [#allocation7], %s44
      %s47 = sshll.u32 [#allocation6], 4
      %s48 = int_to_ptr.vmem [resolvable:$true] %s47
      %50 = dma.hbm_to_vmem [thread:$0]  %s5, 16, %s48, [#allocation7]
    $region25: #{tpu_custom_call.1} parent=1 // pred_fallthru
      _
    // Predicated region
    $region26: #{tpu_custom_call.1} parent=1 // pred_check
      _
    $region27: #{tpu_custom_call.1} parent=1 // pred_check_branch
      %52 = sbr.rel (0) target = $region29
    $region28: #{tpu_custom_call.1} parent=1 // pred_region
      %s54 = ssub.s32 128, 128
      %55 = vsyncadd [#allocation7], %s54
      %s57 = sshll.u32 [#allocation8], 4
      %s58 = int_to_ptr.vmem [resolvable:$true] %s57
      %60 = dma.hbm_to_vmem [thread:$0]  %s6, 128, %s58, [#allocation7]
    $region29: #{tpu_custom_call.1} parent=1 // pred_fallthru
      _
    // Predicated region
    $region30: #{tpu_custom_call.1} parent=1 // pred_check
      _
    $region31: #{tpu_custom_call.1} parent=1 // pred_check_branch
      %62 = sbr.rel (0) target = $region33
    $region32: #{tpu_custom_call.1} parent=1 // pred_region
      _
    $region33: #{tpu_custom_call.1} parent=1 // pred_fallthru
      _
    // Predicated region
    $region34: #{tpu_custom_call.1} parent=1 // pred_check
      _
    $region35: #{tpu_custom_call.1} parent=1 // pred_check_branch
      %64 = sbr.rel (0) target = $region37
    $region36: #{tpu_custom_call.1} parent=1 // pred_region
      _
    $region37: #{tpu_custom_call.1} parent=1 // pred_fallthru
      _
    // Predicated region
    $region38: #{tpu_custom_call.1} parent=1 // pred_check
      _
    $region39: #{tpu_custom_call.1} parent=1 // pred_check_branch
      %66 = sbr.rel (0) target = $region41
    $region40: #{tpu_custom_call.1} parent=1 // pred_region
      _
    $region41: #{tpu_custom_call.1} parent=1 // pred_fallthru
      _
    // Predicated region
    $region42: #{tpu_custom_call.1} parent=1 // pred_check
      _
    $region43: #{tpu_custom_call.1} parent=1 // pred_check_branch
      %68 = sbr.rel (0) target = $region45
    $region44: #{tpu_custom_call.1} parent=1 // pred_region
      _
    $region45: #{tpu_custom_call.1} parent=1 // pred_fallthru
      _
    // Predicated region
    $region46: #{tpu_custom_call.1} parent=1 // pred_check
      _
    $region47: #{tpu_custom_call.1} parent=1 // pred_check_branch
      %70 = sbr.rel (0) target = $region49
    $region48: #{tpu_custom_call.1} parent=1 // pred_region
      _
    $region49: #{tpu_custom_call.1} parent=1 // pred_fallthru
      _
    // Predicated region
    $region50: #{tpu_custom_call.1} parent=1 // pred_check
      _
    $region51: #{tpu_custom_call.1} parent=1 // pred_check_branch
      %72 = sbr.rel (0) target = $region53
    $region52: #{tpu_custom_call.1} parent=1 // pred_region
      _
    $region53: #{tpu_custom_call.1} parent=1 // pred_fallthru
      _
    // Predicated region
    $region54: #{tpu_custom_call.1} parent=1 // pred_check
      _
    $region55: #{tpu_custom_call.1} parent=1 // pred_check_branch
      %74 = sbr.rel (0) target = $region57
    $region56: #{tpu_custom_call.1} parent=1 // pred_region
      %75 = dma.done [#allocation4], 16
    $region57: #{tpu_custom_call.1} parent=1 // pred_fallthru
      _
    // Predicated region
    $region58: #{tpu_custom_call.1} parent=1 // pred_check
      _
    $region59: #{tpu_custom_call.1} parent=1 // pred_check_branch
      %77 = sbr.rel (0) target = $region61
    $region60: #{tpu_custom_call.1} parent=1 // pred_region
      %78 = dma.done [#allocation7], 16
    $region61: #{tpu_custom_call.1} parent=1 // pred_fallthru
      _
    // Predicated region
    $region62: #{tpu_custom_call.1} parent=1 // pred_check
      _
    $region63: #{tpu_custom_call.1} parent=1 // pred_check_branch
      %80 = sbr.rel (0) target = $region65
    $region64: #{tpu_custom_call.1} parent=1 // pred_region
      %81 = dma.done [#allocation7], 128
    $region65: #{tpu_custom_call.1} parent=1 // pred_fallthru
      _
    %v82 = vld [vmem:[%s0] sm:$0xff]
    %v83 = vld [vmem:[%s0 + $0x8] sm:$0xff]
    %v84 = vld [vmem:[%s2] sm:$0xff]
    %v85 = vld [vmem:[%s2 + $0x8] sm:$0xff]
    %v86 = vld [vmem:[%s2 + $0x10] sm:$0xff]
    %v87 = vld [vmem:[%s2 + $0x18] sm:$0xff]
    %v88 = vld [vmem:[#allocation3] sm:$0x1]
    %v90 = vlaneseq
    %v91 = vshrl.u32 %v90, 7
    %v92 = vsub.s32 0, %v91
    %v93 = vrot.slane %v88, %v92
    %vm95 = vcmask 261120
    %v97 = vsel %vm95, %v82, 0
    %v100 = vsel %vm95, %v83, 0
    %102 = vmatprep.subr.mxu0 0.0
    %103 = vmatpush1.msra.mxu0 %v84
    %104 = vmatprep.subr.mxu0 0.0
    %105 = vmatpush1.msra.mxu0 %v85
    %106 = vmatprep.subr.mxu0 0.0
    %107 = vmatpush1.msra.mxu0 %v86
    %108 = vmatprep.subr.mxu0 0.0
    %109 = vmatpush1.msra.mxu0 %v87
    %110 = vmatprep.subr.mxu0 0.0
    %111 = vmatpush1.msra.mxu0 0.0
    %112 = vmatprep.subr.mxu0 0.0
    %113 = vmatpush1.msra.mxu0 0.0
    %114 = vmatprep.subr.mxu0 0.0
    %115 = vmatpush1.msra.mxu0 0.0
    %116 = vmatprep.subr.mxu0 0.0
    %117 = vmatpush1.msra.mxu0 0.0
    %118 = vmatprep.subr.mxu0 0.0
    %119 = vmatpush1.msra.mxu0 0.0
    %120 = vmatprep.subr.mxu0 0.0
    %121 = vmatpush1.msra.mxu0 0.0
    %122 = vmatprep.subr.mxu0 0.0
    %123 = vmatpush1.msra.mxu0 0.0
    %124 = vmatprep.subr.mxu0 0.0
    %125 = vmatpush1.msra.mxu0 0.0
    %126 = vmatprep.subr.mxu0 0.0
    %127 = vmatpush1.msra.mxu0 0.0
    %128 = vmatprep.subr.mxu0 0.0
    %129 = vmatpush1.msra.mxu0 0.0
    %130 = vmatprep.subr.mxu0 0.0
    %131 = vmatpush1.msra.mxu0 0.0
    %132 = vmatprep.subr.mxu0 0.0
    %133 = vmatpush1.msra.mxu0 0.0
    %134 = vmatprep.subr.mxu0 0.0
    %135 = vmatpush1.msra.mxu0 0.0
    %136 = vmatprep.subr.mxu0 0.0
    %137 = vmatpush1.msra.mxu0 0.0
    %138 = vmatprep.subr.mxu0 0.0
    %139 = vmatpush1.msra.mxu0 0.0
    %140 = vmatprep.subr.mxu0 0.0
    %141 = vmatpush1.msra.mxu0 0.0
    %142 = vmatprep.subr.mxu0 0.0
    %143 = vmatpush1.msra.mxu0 0.0
    %144 = vmatprep.subr.mxu0 0.0
    %145 = vmatpush1.msra.mxu0 0.0
    %146 = vmatprep.subr.mxu0 0.0
    %147 = vmatpush1.msra.mxu0 0.0
    %148 = vmatprep.subr.mxu0 0.0
    %149 = vmatpush1.msra.mxu0 0.0
    %150 = vmatprep.subr.mxu0 0.0
    %151 = vmatpush1.msra.mxu0 0.0
    %152 = vmatprep.subr.mxu0 0.0
    %153 = vmatpush1.msra.mxu0 0.0
    %154 = vmatprep.subr.mxu0 0.0
    %155 = vmatpush1.msra.mxu0 0.0
    %156 = vmatprep.subr.mxu0 0.0
    %157 = vmatpush1.msra.mxu0 0.0
    %158 = vmatprep.subr.mxu0 0.0
    %159 = vmatpush1.msra.mxu0 0.0
    %160 = vmatprep.subr.mxu0 0.0
    %161 = vmatpush1.msra.mxu0 0.0
    %162 = vmatprep.subr.mxu0 0.0
    %163 = vmatpush1.msra.mxu0 0.0
    %164 = vmatprep.subr.mxu0 0.0
    %165 = vmatpush1.msra.mxu0 0.0
    %166 = vmatprep.mubr.f32.mxu0 0.0
    %167 = vmatmul.mubr.f32.gmra.mrb[0].mxu0 %v97
    %v168 = vpop.f32.mrb[0].mxu0
    %v169 = vadd.f32 %v93, %v168
    %v170 = vpop.f32.mrb[0].mxu0
    %171 = vmatprep.mubr.f32.mxu0 0.0
    %172 = vmatmul.mubr.f32.gmra.mrb[0].mxu0 %v100
    %v173 = vpop.f32.mrb[0].mxu0
    %v174 = vadd.f32 %v93, %v173
    %v175 = vpop.f32.mrb[0].mxu0
    %176 = vdwg.mxu0
    %v177 = vmax.f32 %v169, 0.0
    %v178 = vmax.f32 %v174, 0.0
    %v179 = vld [vmem:[%s4] sm:$0xff]
    %v180 = vld [vmem:[%s4 + $0x8] sm:$0xff]
    %v181 = vld [vmem:[%s4 + $0x10] sm:$0xff]
    %v182 = vld [vmem:[%s4 + $0x18] sm:$0xff]
    %v183 = vld [vmem:[%s4 + $0x20] sm:$0xff]
    %v184 = vld [vmem:[%s4 + $0x28] sm:$0x3]
    %v185 = vld [vmem:[#allocation6] sm:$0x1]
    %v187 = vlaneseq
    %v188 = vshrl.u32 %v187, 7
    %v189 = vsub.s32 0, %v188
    %v190 = vrot.slane %v185, %v189
    %vm192 = vcmask 343040
    %v194 = vsel %vm192, %v177, 0
    %v197 = vsel %vm192, %v178, 0
    %vm199 = vcmask 1041408
    %v201 = vsel %vm199, %v184, 0
    %203 = vmatprep.subr.mxu0 0.0
    %204 = vmatpush1.msra.mxu0 %v179
    %205 = vmatprep.subr.mxu0 0.0
    %206 = vmatpush1.msra.mxu0 %v180
    %207 = vmatprep.subr.mxu0 0.0
    %208 = vmatpush1.msra.mxu0 %v181
    %209 = vmatprep.subr.mxu0 0.0
    %210 = vmatpush1.msra.mxu0 %v182
    %211 = vmatprep.subr.mxu0 0.0
    %212 = vmatpush1.msra.mxu0 %v183
    %213 = vmatprep.subr.mxu0 0.0
    %214 = vmatpush1.msra.mxu0 %v201
    %215 = vmatprep.subr.mxu0 0.0
    %216 = vmatpush1.msra.mxu0 0.0
    %217 = vmatprep.subr.mxu0 0.0
    %218 = vmatpush1.msra.mxu0 0.0
    %219 = vmatprep.subr.mxu0 0.0
    %220 = vmatpush1.msra.mxu0 0.0
    %221 = vmatprep.subr.mxu0 0.0
    %222 = vmatpush1.msra.mxu0 0.0
    %223 = vmatprep.subr.mxu0 0.0
    %224 = vmatpush1.msra.mxu0 0.0
    %225 = vmatprep.subr.mxu0 0.0
    %226 = vmatpush1.msra.mxu0 0.0
    %227 = vmatprep.subr.mxu0 0.0
    %228 = vmatpush1.msra.mxu0 0.0
    %229 = vmatprep.subr.mxu0 0.0
    %230 = vmatpush1.msra.mxu0 0.0
    %231 = vmatprep.subr.mxu0 0.0
    %232 = vmatpush1.msra.mxu0 0.0
    %233 = vmatprep.subr.mxu0 0.0
    %234 = vmatpush1.msra.mxu0 0.0
    %235 = vmatprep.subr.mxu0 0.0
    %236 = vmatpush1.msra.mxu0 0.0
    %237 = vmatprep.subr.mxu0 0.0
    %238 = vmatpush1.msra.mxu0 0.0
    %239 = vmatprep.subr.mxu0 0.0
    %240 = vmatpush1.msra.mxu0 0.0
    %241 = vmatprep.subr.mxu0 0.0
    %242 = vmatpush1.msra.mxu0 0.0
    %243 = vmatprep.subr.mxu0 0.0
    %244 = vmatpush1.msra.mxu0 0.0
    %245 = vmatprep.subr.mxu0 0.0
    %246 = vmatpush1.msra.mxu0 0.0
    %247 = vmatprep.subr.mxu0 0.0
    %248 = vmatpush1.msra.mxu0 0.0
    %249 = vmatprep.subr.mxu0 0.0
    %250 = vmatpush1.msra.mxu0 0.0
    %251 = vmatprep.subr.mxu0 0.0
    %252 = vmatpush1.msra.mxu0 0.0
    %253 = vmatprep.subr.mxu0 0.0
    %254 = vmatpush1.msra.mxu0 0.0
    %255 = vmatprep.subr.mxu0 0.0
    %256 = vmatpush1.msra.mxu0 0.0
    %257 = vmatprep.subr.mxu0 0.0
    %258 = vmatpush1.msra.mxu0 0.0
    %259 = vmatprep.subr.mxu0 0.0
    %260 = vmatpush1.msra.mxu0 0.0
    %261 = vmatprep.subr.mxu0 0.0
    %262 = vmatpush1.msra.mxu0 0.0
    %263 = vmatprep.subr.mxu0 0.0
    %264 = vmatpush1.msra.mxu0 0.0
    %265 = vmatprep.subr.mxu0 0.0
    %266 = vmatpush1.msra.mxu0 0.0
    %267 = vmatprep.mubr.f32.mxu0 0.0
    %268 = vmatmul.mubr.f32.gmra.mrb[0].mxu0 %v194
    %v269 = vpop.f32.mrb[0].mxu0
    %v270 = vadd.f32 %v190, %v269
    %v271 = vpop.f32.mrb[0].mxu0
    %272 = vmatprep.mubr.f32.mxu0 0.0
    %273 = vmatmul.mubr.f32.gmra.mrb[0].mxu0 %v197
    %v274 = vpop.f32.mrb[0].mxu0
    %v275 = vadd.f32 %v190, %v274
    %v276 = vpop.f32.mrb[0].mxu0
    %277 = vdwg.mxu0
    %v278 = vld [vmem:[%s8] sm:$0xff]
    %v279 = vld [vmem:[%s8 + $0x8] sm:$0xff]
    %v280 = vld [vmem:[%s9] sm:$0x1]
    %v282 = vlaneseq
    %v283 = vshrl.u32 %v282, 7
    %v284 = vsub.s32 0, %v283
    %v285 = vrot.slane %v280, %v284
    %vm287 = vcmask 130048
    %v289 = vsel %vm287, %v270, 0
    %v292 = vsel %vm287, %v275, 0
    %294 = vmatprep.subr.mxu0 0.0
    %295 = vmatpush1.msra.mxu0 %v278
    %296 = vmatprep.subr.mxu0 0.0
    %297 = vmatpush1.msra.mxu0 %v279
    %298 = vmatprep.subr.mxu0 0.0
    %299 = vmatpush1.msra.mxu0 0.0
    %300 = vmatprep.subr.mxu0 0.0
    %301 = vmatpush1.msra.mxu0 0.0
    %302 = vmatprep.subr.mxu0 0.0
    %303 = vmatpush1.msra.mxu0 0.0
    %304 = vmatprep.subr.mxu0 0.0
    %305 = vmatpush1.msra.mxu0 0.0
    %306 = vmatprep.subr.mxu0 0.0
    %307 = vmatpush1.msra.mxu0 0.0
    %308 = vmatprep.subr.mxu0 0.0
    %309 = vmatpush1.msra.mxu0 0.0
    %310 = vmatprep.subr.mxu0 0.0
    %311 = vmatpush1.msra.mxu0 0.0
    %312 = vmatprep.subr.mxu0 0.0
    %313 = vmatpush1.msra.mxu0 0.0
    %314 = vmatprep.subr.mxu0 0.0
    %315 = vmatpush1.msra.mxu0 0.0
    %316 = vmatprep.subr.mxu0 0.0
    %317 = vmatpush1.msra.mxu0 0.0
    %318 = vmatprep.subr.mxu0 0.0
    %319 = vmatpush1.msra.mxu0 0.0
    %320 = vmatprep.subr.mxu0 0.0
    %321 = vmatpush1.msra.mxu0 0.0
    %322 = vmatprep.subr.mxu0 0.0
    %323 = vmatpush1.msra.mxu0 0.0
    %324 = vmatprep.subr.mxu0 0.0
    %325 = vmatpush1.msra.mxu0 0.0
    %326 = vmatprep.subr.mxu0 0.0
    %327 = vmatpush1.msra.mxu0 0.0
    %328 = vmatprep.subr.mxu0 0.0
    %329 = vmatpush1.msra.mxu0 0.0
    %330 = vmatprep.subr.mxu0 0.0
    %331 = vmatpush1.msra.mxu0 0.0
    %332 = vmatprep.subr.mxu0 0.0
    %333 = vmatpush1.msra.mxu0 0.0
    %334 = vmatprep.subr.mxu0 0.0
    %335 = vmatpush1.msra.mxu0 0.0
    %336 = vmatprep.subr.mxu0 0.0
    %337 = vmatpush1.msra.mxu0 0.0
    %338 = vmatprep.subr.mxu0 0.0
    %339 = vmatpush1.msra.mxu0 0.0
    %340 = vmatprep.subr.mxu0 0.0
    %341 = vmatpush1.msra.mxu0 0.0
    %342 = vmatprep.subr.mxu0 0.0
    %343 = vmatpush1.msra.mxu0 0.0
    %344 = vmatprep.subr.mxu0 0.0
    %345 = vmatpush1.msra.mxu0 0.0
    %346 = vmatprep.subr.mxu0 0.0
    %347 = vmatpush1.msra.mxu0 0.0
    %348 = vmatprep.subr.mxu0 0.0
    %349 = vmatpush1.msra.mxu0 0.0
    %350 = vmatprep.subr.mxu0 0.0
    %351 = vmatpush1.msra.mxu0 0.0
    %352 = vmatprep.subr.mxu0 0.0
    %353 = vmatpush1.msra.mxu0 0.0
    %354 = vmatprep.subr.mxu0 0.0
    %355 = vmatpush1.msra.mxu0 0.0
    %356 = vmatprep.subr.mxu0 0.0
    %357 = vmatpush1.msra.mxu0 0.0
    %358 = vmatprep.mubr.f32.mxu0 0.0
    %359 = vmatmul.mubr.f32.gmra.mrb[0].mxu0 %v289
    %v360 = vpop.f32.mrb[0].mxu0
    %v361 = vadd.f32 %v285, %v360
    %v362 = vpop.f32.mrb[0].mxu0
    %363 = vmatprep.mubr.f32.mxu0 0.0
    %364 = vmatmul.mubr.f32.gmra.mrb[0].mxu0 %v292
    %v365 = vpop.f32.mrb[0].mxu0
    %v366 = vadd.f32 %v285, %v365
    %v367 = vpop.f32.mrb[0].mxu0
    %368 = vdwg.mxu0
    %v369 = vld [vmem:[%s1] sm:$0x3]
    %v370 = vld [vmem:[#allocation8] sm:$0xff]
    %v371 = vld [vmem:[%s7] sm:$0x1]
    %v373 = vlaneseq
    %v374 = vshrl.u32 %v373, 7
    %v375 = vsub.s32 0, %v374
    %v376 = vrot.slane %v371, %v375
    %vm378 = vcmask 64512
    %v380 = vsel %vm378, %v369, 0
    %382 = vmatprep.subr.mxu0 0.0
    %383 = vmatpush1.msra.mxu0 %v370
    %384 = vmatprep.subr.mxu0 0.0
    %385 = vmatpush1.msra.mxu0 0.0
    %386 = vmatprep.subr.mxu0 0.0
    %387 = vmatpush1.msra.mxu0 0.0
    %388 = vmatprep.subr.mxu0 0.0
    %389 = vmatpush1.msra.mxu0 0.0
    %390 = vmatprep.subr.mxu0 0.0
    %391 = vmatpush1.msra.mxu0 0.0
    %392 = vmatprep.subr.mxu0 0.0
    %393 = vmatpush1.msra.mxu0 0.0
    %394 = vmatprep.subr.mxu0 0.0
    %395 = vmatpush1.msra.mxu0 0.0
    %396 = vmatprep.subr.mxu0 0.0
    %397 = vmatpush1.msra.mxu0 0.0
    %398 = vmatprep.subr.mxu0 0.0
    %399 = vmatpush1.msra.mxu0 0.0
    %400 = vmatprep.subr.mxu0 0.0
    %401 = vmatpush1.msra.mxu0 0.0
    %402 = vmatprep.subr.mxu0 0.0
    %403 = vmatpush1.msra.mxu0 0.0
    %404 = vmatprep.subr.mxu0 0.0
    %405 = vmatpush1.msra.mxu0 0.0
    %406 = vmatprep.subr.mxu0 0.0
    %407 = vmatpush1.msra.mxu0 0.0
    %408 = vmatprep.subr.mxu0 0.0
    %409 = vmatpush1.msra.mxu0 0.0
    %410 = vmatprep.subr.mxu0 0.0
    %411 = vmatpush1.msra.mxu0 0.0
    %412 = vmatprep.subr.mxu0 0.0
    %413 = vmatpush1.msra.mxu0 0.0
    %414 = vmatprep.subr.mxu0 0.0
    %415 = vmatpush1.msra.mxu0 0.0
    %416 = vmatprep.subr.mxu0 0.0
    %417 = vmatpush1.msra.mxu0 0.0
    %418 = vmatprep.subr.mxu0 0.0
    %419 = vmatpush1.msra.mxu0 0.0
    %420 = vmatprep.subr.mxu0 0.0
    %421 = vmatpush1.msra.mxu0 0.0
    %422 = vmatprep.subr.mxu0 0.0
    %423 = vmatpush1.msra.mxu0 0.0
    %424 = vmatprep.subr.mxu0 0.0
    %425 = vmatpush1.msra.mxu0 0.0
    %426 = vmatprep.subr.mxu0 0.0
    %427 = vmatpush1.msra.mxu0 0.0
    %428 = vmatprep.subr.mxu0 0.0
    %429 = vmatpush1.msra.mxu0 0.0
    %430 = vmatprep.subr.mxu0 0.0
    %431 = vmatpush1.msra.mxu0 0.0
    %432 = vmatprep.subr.mxu0 0.0
    %433 = vmatpush1.msra.mxu0 0.0
    %434 = vmatprep.subr.mxu0 0.0
    %435 = vmatpush1.msra.mxu0 0.0
    %436 = vmatprep.subr.mxu0 0.0
    %437 = vmatpush1.msra.mxu0 0.0
    %438 = vmatprep.subr.mxu0 0.0
    %439 = vmatpush1.msra.mxu0 0.0
    %440 = vmatprep.subr.mxu0 0.0
    %441 = vmatpush1.msra.mxu0 0.0
    %442 = vmatprep.subr.mxu0 0.0
    %443 = vmatpush1.msra.mxu0 0.0
    %444 = vmatprep.subr.mxu0 0.0
    %445 = vmatpush1.msra.mxu0 0.0
    %446 = vmatprep.mubr.f32.mxu0 0.0
    %447 = vmatmul.mubr.f32.gmra.mrb[0].mxu0 %v380
    %v448 = vpop.f32.mrb[0].mxu0
    %v449 = vadd.f32 %v376, %v448
    %v450 = vpop.f32.mrb[0].mxu0
    %451 = vdwg.mxu0
    %v452 = vtanh.pop %v449
    %v453 = vld [vmem:[%s10] sm:$0xff]
    %v454 = vld [vmem:[%s10 + $0x8] sm:$0xff]
    %v455 = vld [vmem:[%s10 + $0x10] sm:$0xff]
    %v456 = vld [vmem:[%s10 + $0x18] sm:$0xff]
    %v458 = vsel %vm95, %v452, 0
    %460 = vmatprep.subr.mxu0 0.0
    %461 = vmatpush1.msra.mxu0 %v453
    %462 = vmatprep.subr.mxu0 0.0
    %463 = vmatpush1.msra.mxu0 %v454
    %464 = vmatprep.subr.mxu0 0.0
    %465 = vmatpush1.msra.mxu0 %v455
    %466 = vmatprep.subr.mxu0 0.0
    %467 = vmatpush1.msra.mxu0 %v456
    %468 = vmatprep.subr.mxu0 0.0
    %469 = vmatpush1.msra.mxu0 0.0
    %470 = vmatprep.subr.mxu0 0.0
    %471 = vmatpush1.msra.mxu0 0.0
    %472 = vmatprep.subr.mxu0 0.0
    %473 = vmatpush1.msra.mxu0 0.0
    %474 = vmatprep.subr.mxu0 0.0
    %475 = vmatpush1.msra.mxu0 0.0
    %476 = vmatprep.subr.mxu0 0.0
    %477 = vmatpush1.msra.mxu0 0.0
    %478 = vmatprep.subr.mxu0 0.0
    %479 = vmatpush1.msra.mxu0 0.0
    %480 = vmatprep.subr.mxu0 0.0
    %481 = vmatpush1.msra.mxu0 0.0
    %482 = vmatprep.subr.mxu0 0.0
    %483 = vmatpush1.msra.mxu0 0.0
    %484 = vmatprep.subr.mxu0 0.0
    %485 = vmatpush1.msra.mxu0 0.0
    %486 = vmatprep.subr.mxu0 0.0
    %487 = vmatpush1.msra.mxu0 0.0
    %488 = vmatprep.subr.mxu0 0.0
    %489 = vmatpush1.msra.mxu0 0.0
    %490 = vmatprep.subr.mxu0 0.0
    %491 = vmatpush1.msra.mxu0 0.0
    %492 = vmatprep.subr.mxu0 0.0
    %493 = vmatpush1.msra.mxu0 0.0
    %494 = vmatprep.subr.mxu0 0.0
    %495 = vmatpush1.msra.mxu0 0.0
    %496 = vmatprep.subr.mxu0 0.0
    %497 = vmatpush1.msra.mxu0 0.0
    %498 = vmatprep.subr.mxu0 0.0
    %499 = vmatpush1.msra.mxu0 0.0
    %500 = vmatprep.subr.mxu0 0.0
    %501 = vmatpush1.msra.mxu0 0.0
    %502 = vmatprep.subr.mxu0 0.0
    %503 = vmatpush1.msra.mxu0 0.0
    %504 = vmatprep.subr.mxu0 0.0
    %505 = vmatpush1.msra.mxu0 0.0
    %506 = vmatprep.subr.mxu0 0.0
    %507 = vmatpush1.msra.mxu0 0.0
    %508 = vmatprep.subr.mxu0 0.0
    %509 = vmatpush1.msra.mxu0 0.0
    %510 = vmatprep.subr.mxu0 0.0
    %511 = vmatpush1.msra.mxu0 0.0
    %512 = vmatprep.subr.mxu0 0.0
    %513 = vmatpush1.msra.mxu0 0.0
    %514 = vmatprep.subr.mxu0 0.0
    %515 = vmatpush1.msra.mxu0 0.0
    %516 = vmatprep.subr.mxu0 0.0
    %517 = vmatpush1.msra.mxu0 0.0
    %518 = vmatprep.subr.mxu0 0.0
    %519 = vmatpush1.msra.mxu0 0.0
    %520 = vmatprep.subr.mxu0 0.0
    %521 = vmatpush1.msra.mxu0 0.0
    %522 = vmatprep.subr.mxu0 0.0
    %523 = vmatpush1.msra.mxu0 0.0
    %524 = vmatprep.mubr.f32.mxu0 0.0
    %525 = vmatmul.mubr.f32.gmra.mrb[0].mxu0 %v458
    %v526 = vpop.f32.mrb[0].mxu0
    %v527 = vadd.f32 0.0, %v526
    %v528 = vpop.f32.mrb[0].mxu0
    %529 = vdwg.mxu0
    %v530 = vadd.f32 %v361, %v527
    %v531 = vtanh.pop %v530
    %vm532 = vcmask 254976
    %533 = vst.msk [vmem:[#allocation2] sm:$0x3] %vm532, %v531
    %v535 = vsel %vm95, %v531, 0
    %537 = vmatprep.subr.mxu0 0.0
    %538 = vmatpush1.msra.mxu0 %v453
    %539 = vmatprep.subr.mxu0 0.0
    %540 = vmatpush1.msra.mxu0 %v454
    %541 = vmatprep.subr.mxu0 0.0
    %542 = vmatpush1.msra.mxu0 %v455
    %543 = vmatprep.subr.mxu0 0.0
    %544 = vmatpush1.msra.mxu0 %v456
    %545 = vmatprep.subr.mxu0 0.0
    %546 = vmatpush1.msra.mxu0 0.0
    %547 = vmatprep.subr.mxu0 0.0
    %548 = vmatpush1.msra.mxu0 0.0
    %549 = vmatprep.subr.mxu0 0.0
    %550 = vmatpush1.msra.mxu0 0.0
    %551 = vmatprep.subr.mxu0 0.0
    %552 = vmatpush1.msra.mxu0 0.0
    %553 = vmatprep.subr.mxu0 0.0
    %554 = vmatpush1.msra.mxu0 0.0
    %555 = vmatprep.subr.mxu0 0.0
    %556 = vmatpush1.msra.mxu0 0.0
    %557 = vmatprep.subr.mxu0 0.0
    %558 = vmatpush1.msra.mxu0 0.0
    %559 = vmatprep.subr.mxu0 0.0
    %560 = vmatpush1.msra.mxu0 0.0
    %561 = vmatprep.subr.mxu0 0.0
    %562 = vmatpush1.msra.mxu0 0.0
    %563 = vmatprep.subr.mxu0 0.0
    %564 = vmatpush1.msra.mxu0 0.0
    %565 = vmatprep.subr.mxu0 0.0
    %566 = vmatpush1.msra.mxu0 0.0
    %567 = vmatprep.subr.mxu0 0.0
    %568 = vmatpush1.msra.mxu0 0.0
    %569 = vmatprep.subr.mxu0 0.0
    %570 = vmatpush1.msra.mxu0 0.0
    %571 = vmatprep.subr.mxu0 0.0
    %572 = vmatpush1.msra.mxu0 0.0
    %573 = vmatprep.subr.mxu0 0.0
    %574 = vmatpush1.msra.mxu0 0.0
    %575 = vmatprep.subr.mxu0 0.0
    %576 = vmatpush1.msra.mxu0 0.0
    %577 = vmatprep.subr.mxu0 0.0
    %578 = vmatpush1.msra.mxu0 0.0
    %579 = vmatprep.subr.mxu0 0.0
    %580 = vmatpush1.msra.mxu0 0.0
    %581 = vmatprep.subr.mxu0 0.0
    %582 = vmatpush1.msra.mxu0 0.0
    %583 = vmatprep.subr.mxu0 0.0
    %584 = vmatpush1.msra.mxu0 0.0
    %585 = vmatprep.subr.mxu0 0.0
    %586 = vmatpush1.msra.mxu0 0.0
    %587 = vmatprep.subr.mxu0 0.0
    %588 = vmatpush1.msra.mxu0 0.0
    %589 = vmatprep.subr.mxu0 0.0
    %590 = vmatpush1.msra.mxu0 0.0
    %591 = vmatprep.subr.mxu0 0.0
    %592 = vmatpush1.msra.mxu0 0.0
    %593 = vmatprep.subr.mxu0 0.0
    %594 = vmatpush1.msra.mxu0 0.0
    %595 = vmatprep.subr.mxu0 0.0
    %596 = vmatpush1.msra.mxu0 0.0
    %597 = vmatprep.subr.mxu0 0.0
    %598 = vmatpush1.msra.mxu0 0.0
    %599 = vmatprep.subr.mxu0 0.0
    %600 = vmatpush1.msra.mxu0 0.0
    %601 = vmatprep.mubr.f32.mxu0 0.0
    %602 = vmatmul.mubr.f32.gmra.mrb[0].mxu0 %v535
    %v603 = vpop.f32.mrb[0].mxu0
    %v604 = vadd.f32 0.0, %v603
    %v605 = vpop.f32.mrb[0].mxu0
    %606 = vdwg.mxu0
    %v608 = vrot.slane %v604, 6
    %v610 = vadd.f32 %v361, %v608
    %v611 = vtanh.pop %v610
    %vm612 = vcmask 257026
    %613 = vst.msk [vmem:[#allocation2] sm:$0xc] %vm612, %v611
    %v615 = vrot.slane %v611, 2
    %v616 = vsel %vm95, %v615, 0
    %618 = vmatprep.subr.mxu0 0.0
    %619 = vmatpush1.msra.mxu0 %v453
    %620 = vmatprep.subr.mxu0 0.0
    %621 = vmatpush1.msra.mxu0 %v454
    %622 = vmatprep.subr.mxu0 0.0
    %623 = vmatpush1.msra.mxu0 %v455
    %624 = vmatprep.subr.mxu0 0.0
    %625 = vmatpush1.msra.mxu0 %v456
    %626 = vmatprep.subr.mxu0 0.0
    %627 = vmatpush1.msra.mxu0 0.0
    %628 = vmatprep.subr.mxu0 0.0
    %629 = vmatpush1.msra.mxu0 0.0
    %630 = vmatprep.subr.mxu0 0.0
    %631 = vmatpush1.msra.mxu0 0.0
    %632 = vmatprep.subr.mxu0 0.0
    %633 = vmatpush1.msra.mxu0 0.0
    %634 = vmatprep.subr.mxu0 0.0
    %635 = vmatpush1.msra.mxu0 0.0
    %636 = vmatprep.subr.mxu0 0.0
    %637 = vmatpush1.msra.mxu0 0.0
    %638 = vmatprep.subr.mxu0 0.0
    %639 = vmatpush1.msra.mxu0 0.0
    %640 = vmatprep.subr.mxu0 0.0
    %641 = vmatpush1.msra.mxu0 0.0
    %642 = vmatprep.subr.mxu0 0.0
    %643 = vmatpush1.msra.mxu0 0.0
    %644 = vmatprep.subr.mxu0 0.0
    %645 = vmatpush1.msra.mxu0 0.0
    %646 = vmatprep.subr.mxu0 0.0
    %647 = vmatpush1.msra.mxu0 0.0
    %648 = vmatprep.subr.mxu0 0.0
    %649 = vmatpush1.msra.mxu0 0.0
    %650 = vmatprep.subr.mxu0 0.0
    %651 = vmatpush1.msra.mxu0 0.0
    %652 = vmatprep.subr.mxu0 0.0
    %653 = vmatpush1.msra.mxu0 0.0
    %654 = vmatprep.subr.mxu0 0.0
    %655 = vmatpush1.msra.mxu0 0.0
    %656 = vmatprep.subr.mxu0 0.0
    %657 = vmatpush1.msra.mxu0 0.0
    %658 = vmatprep.subr.mxu0 0.0
    %659 = vmatpush1.msra.mxu0 0.0
    %660 = vmatprep.subr.mxu0 0.0
    %661 = vmatpush1.msra.mxu0 0.0
    %662 = vmatprep.subr.mxu0 0.0
    %663 = vmatpush1.msra.mxu0 0.0
    %664 = vmatprep.subr.mxu0 0.0
    %665 = vmatpush1.msra.mxu0 0.0
    %666 = vmatprep.subr.mxu0 0.0
    %667 = vmatpush1.msra.mxu0 0.0
    %668 = vmatprep.subr.mxu0 0.0
    %669 = vmatpush1.msra.mxu0 0.0
    %670 = vmatprep.subr.mxu0 0.0
    %671 = vmatpush1.msra.mxu0 0.0
    %672 = vmatprep.subr.mxu0 0.0
    %673 = vmatpush1.msra.mxu0 0.0
    %674 = vmatprep.subr.mxu0 0.0
    %675 = vmatpush1.msra.mxu0 0.0
    %676 = vmatprep.subr.mxu0 0.0
    %677 = vmatpush1.msra.mxu0 0.0
    %678 = vmatprep.subr.mxu0 0.0
    %679 = vmatpush1.msra.mxu0 0.0
    %680 = vmatprep.subr.mxu0 0.0
    %681 = vmatpush1.msra.mxu0 0.0
    %682 = vmatprep.mubr.f32.mxu0 0.0
    %683 = vmatmul.mubr.f32.gmra.mrb[0].mxu0 %v616
    %v684 = vpop.f32.mrb[0].mxu0
    %v685 = vadd.f32 0.0, %v684
    %v686 = vpop.f32.mrb[0].mxu0
    %687 = vdwg.mxu0
    %v689 = vrot.slane %v685, 4
    %v691 = vadd.f32 %v361, %v689
    %v692 = vtanh.pop %v691
    %vm693 = vcmask 259076
    %694 = vst.msk [vmem:[#allocation2] sm:$0x30] %vm693, %v692
    %v696 = vrot.slane %v692, 4
    %v697 = vsel %vm95, %v696, 0
    %699 = vmatprep.subr.mxu0 0.0
    %700 = vmatpush1.msra.mxu0 %v453
    %701 = vmatprep.subr.mxu0 0.0
    %702 = vmatpush1.msra.mxu0 %v454
    %703 = vmatprep.subr.mxu0 0.0
    %704 = vmatpush1.msra.mxu0 %v455
    %705 = vmatprep.subr.mxu0 0.0
    %706 = vmatpush1.msra.mxu0 %v456
    %707 = vmatprep.subr.mxu0 0.0
    %708 = vmatpush1.msra.mxu0 0.0
    %709 = vmatprep.subr.mxu0 0.0
    %710 = vmatpush1.msra.mxu0 0.0
    %711 = vmatprep.subr.mxu0 0.0
    %712 = vmatpush1.msra.mxu0 0.0
    %713 = vmatprep.subr.mxu0 0.0
    %714 = vmatpush1.msra.mxu0 0.0
    %715 = vmatprep.subr.mxu0 0.0
    %716 = vmatpush1.msra.mxu0 0.0
    %717 = vmatprep.subr.mxu0 0.0
    %718 = vmatpush1.msra.mxu0 0.0
    %719 = vmatprep.subr.mxu0 0.0
    %720 = vmatpush1.msra.mxu0 0.0
    %721 = vmatprep.subr.mxu0 0.0
    %722 = vmatpush1.msra.mxu0 0.0
    %723 = vmatprep.subr.mxu0 0.0
    %724 = vmatpush1.msra.mxu0 0.0
    %725 = vmatprep.subr.mxu0 0.0
    %726 = vmatpush1.msra.mxu0 0.0
    %727 = vmatprep.subr.mxu0 0.0
    %728 = vmatpush1.msra.mxu0 0.0
    %729 = vmatprep.subr.mxu0 0.0
    %730 = vmatpush1.msra.mxu0 0.0
    %731 = vmatprep.subr.mxu0 0.0
    %732 = vmatpush1.msra.mxu0 0.0
    %733 = vmatprep.subr.mxu0 0.0
    %734 = vmatpush1.msra.mxu0 0.0
    %735 = vmatprep.subr.mxu0 0.0
    %736 = vmatpush1.msra.mxu0 0.0
    %737 = vmatprep.subr.mxu0 0.0
    %738 = vmatpush1.msra.mxu0 0.0
    %739 = vmatprep.subr.mxu0 0.0
    %740 = vmatpush1.msra.mxu0 0.0
    %741 = vmatprep.subr.mxu0 0.0
    %742 = vmatpush1.msra.mxu0 0.0
    %743 = vmatprep.subr.mxu0 0.0
    %744 = vmatpush1.msra.mxu0 0.0
    %745 = vmatprep.subr.mxu0 0.0
    %746 = vmatpush1.msra.mxu0 0.0
    %747 = vmatprep.subr.mxu0 0.0
    %748 = vmatpush1.msra.mxu0 0.0
    %749 = vmatprep.subr.mxu0 0.0
    %750 = vmatpush1.msra.mxu0 0.0
    %751 = vmatprep.subr.mxu0 0.0
    %752 = vmatpush1.msra.mxu0 0.0
    %753 = vmatprep.subr.mxu0 0.0
    %754 = vmatpush1.msra.mxu0 0.0
    %755 = vmatprep.subr.mxu0 0.0
    %756 = vmatpush1.msra.mxu0 0.0
    %757 = vmatprep.subr.mxu0 0.0
    %758 = vmatpush1.msra.mxu0 0.0
    %759 = vmatprep.subr.mxu0 0.0
    %760 = vmatpush1.msra.mxu0 0.0
    %761 = vmatprep.subr.mxu0 0.0
    %762 = vmatpush1.msra.mxu0 0.0
    %763 = vmatprep.mubr.f32.mxu0 0.0
    %764 = vmatmul.mubr.f32.gmra.mrb[0].mxu0 %v697
    %v765 = vpop.f32.mrb[0].mxu0
    %v766 = vadd.f32 0.0, %v765
    %v767 = vpop.f32.mrb[0].mxu0
    %768 = vdwg.mxu0
    %v770 = vrot.slane %v766, 2
    %v772 = vadd.f32 %v361, %v770
    %v773 = vtanh.pop %v772
    %vm774 = vcmask 261126
    %775 = vst.msk [vmem:[#allocation2] sm:$0xc0] %vm774, %v773
    %v777 = vrot.slane %v773, 6
    %v778 = vsel %vm95, %v777, 0
    %780 = vmatprep.subr.mxu0 0.0
    %781 = vmatpush1.msra.mxu0 %v453
    %782 = vmatprep.subr.mxu0 0.0
    %783 = vmatpush1.msra.mxu0 %v454
    %784 = vmatprep.subr.mxu0 0.0
    %785 = vmatpush1.msra.mxu0 %v455
    %786 = vmatprep.subr.mxu0 0.0
    %787 = vmatpush1.msra.mxu0 %v456
    %788 = vmatprep.subr.mxu0 0.0
    %789 = vmatpush1.msra.mxu0 0.0
    %790 = vmatprep.subr.mxu0 0.0
    %791 = vmatpush1.msra.mxu0 0.0
    %792 = vmatprep.subr.mxu0 0.0
    %793 = vmatpush1.msra.mxu0 0.0
    %794 = vmatprep.subr.mxu0 0.0
    %795 = vmatpush1.msra.mxu0 0.0
    %796 = vmatprep.subr.mxu0 0.0
    %797 = vmatpush1.msra.mxu0 0.0
    %798 = vmatprep.subr.mxu0 0.0
    %799 = vmatpush1.msra.mxu0 0.0
    %800 = vmatprep.subr.mxu0 0.0
    %801 = vmatpush1.msra.mxu0 0.0
    %802 = vmatprep.subr.mxu0 0.0
    %803 = vmatpush1.msra.mxu0 0.0
    %804 = vmatprep.subr.mxu0 0.0
    %805 = vmatpush1.msra.mxu0 0.0
    %806 = vmatprep.subr.mxu0 0.0
    %807 = vmatpush1.msra.mxu0 0.0
    %808 = vmatprep.subr.mxu0 0.0
    %809 = vmatpush1.msra.mxu0 0.0
    %810 = vmatprep.subr.mxu0 0.0
    %811 = vmatpush1.msra.mxu0 0.0
    %812 = vmatprep.subr.mxu0 0.0
    %813 = vmatpush1.msra.mxu0 0.0
    %814 = vmatprep.subr.mxu0 0.0
    %815 = vmatpush1.msra.mxu0 0.0
    %816 = vmatprep.subr.mxu0 0.0
    %817 = vmatpush1.msra.mxu0 0.0
    %818 = vmatprep.subr.mxu0 0.0
    %819 = vmatpush1.msra.mxu0 0.0
    %820 = vmatprep.subr.mxu0 0.0
    %821 = vmatpush1.msra.mxu0 0.0
    %822 = vmatprep.subr.mxu0 0.0
    %823 = vmatpush1.msra.mxu0 0.0
    %824 = vmatprep.subr.mxu0 0.0
    %825 = vmatpush1.msra.mxu0 0.0
    %826 = vmatprep.subr.mxu0 0.0
    %827 = vmatpush1.msra.mxu0 0.0
    %828 = vmatprep.subr.mxu0 0.0
    %829 = vmatpush1.msra.mxu0 0.0
    %830 = vmatprep.subr.mxu0 0.0
    %831 = vmatpush1.msra.mxu0 0.0
    %832 = vmatprep.subr.mxu0 0.0
    %833 = vmatpush1.msra.mxu0 0.0
    %834 = vmatprep.subr.mxu0 0.0
    %835 = vmatpush1.msra.mxu0 0.0
    %836 = vmatprep.subr.mxu0 0.0
    %837 = vmatpush1.msra.mxu0 0.0
    %838 = vmatprep.subr.mxu0 0.0
    %839 = vmatpush1.msra.mxu0 0.0
    %840 = vmatprep.subr.mxu0 0.0
    %841 = vmatpush1.msra.mxu0 0.0
    %842 = vmatprep.subr.mxu0 0.0
    %843 = vmatpush1.msra.mxu0 0.0
    %844 = vmatprep.mubr.f32.mxu0 0.0
    %845 = vmatmul.mubr.f32.gmra.mrb[0].mxu0 %v778
    %v846 = vpop.f32.mrb[0].mxu0
    %v847 = vadd.f32 0.0, %v846
    %v848 = vpop.f32.mrb[0].mxu0
    %849 = vdwg.mxu0
    %v850 = vadd.f32 %v366, %v847
    %v851 = vtanh.pop %v850
    %852 = vst.msk [vmem:[#allocation2 + $0x8] sm:$0x3] %vm532, %v851
    %v854 = vsel %vm95, %v851, 0
    %856 = vmatprep.subr.mxu0 0.0
    %857 = vmatpush1.msra.mxu0 %v453
    %858 = vmatprep.subr.mxu0 0.0
    %859 = vmatpush1.msra.mxu0 %v454
    %860 = vmatprep.subr.mxu0 0.0
    %861 = vmatpush1.msra.mxu0 %v455
    %862 = vmatprep.subr.mxu0 0.0
    %863 = vmatpush1.msra.mxu0 %v456
    %864 = vmatprep.subr.mxu0 0.0
    %865 = vmatpush1.msra.mxu0 0.0
    %866 = vmatprep.subr.mxu0 0.0
    %867 = vmatpush1.msra.mxu0 0.0
    %868 = vmatprep.subr.mxu0 0.0
    %869 = vmatpush1.msra.mxu0 0.0
    %870 = vmatprep.subr.mxu0 0.0
    %871 = vmatpush1.msra.mxu0 0.0
    %872 = vmatprep.subr.mxu0 0.0
    %873 = vmatpush1.msra.mxu0 0.0
    %874 = vmatprep.subr.mxu0 0.0
    %875 = vmatpush1.msra.mxu0 0.0
    %876 = vmatprep.subr.mxu0 0.0
    %877 = vmatpush1.msra.mxu0 0.0
    %878 = vmatprep.subr.mxu0 0.0
    %879 = vmatpush1.msra.mxu0 0.0
    %880 = vmatprep.subr.mxu0 0.0
    %881 = vmatpush1.msra.mxu0 0.0
    %882 = vmatprep.subr.mxu0 0.0
    %883 = vmatpush1.msra.mxu0 0.0
    %884 = vmatprep.subr.mxu0 0.0
    %885 = vmatpush1.msra.mxu0 0.0
    %886 = vmatprep.subr.mxu0 0.0
    %887 = vmatpush1.msra.mxu0 0.0
    %888 = vmatprep.subr.mxu0 0.0
    %889 = vmatpush1.msra.mxu0 0.0
    %890 = vmatprep.subr.mxu0 0.0
    %891 = vmatpush1.msra.mxu0 0.0
    %892 = vmatprep.subr.mxu0 0.0
    %893 = vmatpush1.msra.mxu0 0.0
    %894 = vmatprep.subr.mxu0 0.0
    %895 = vmatpush1.msra.mxu0 0.0
    %896 = vmatprep.subr.mxu0 0.0
    %897 = vmatpush1.msra.mxu0 0.0
    %898 = vmatprep.subr.mxu0 0.0
    %899 = vmatpush1.msra.mxu0 0.0
    %900 = vmatprep.subr.mxu0 0.0
    %901 = vmatpush1.msra.mxu0 0.0
    %902 = vmatprep.subr.mxu0 0.0
    %903 = vmatpush1.msra.mxu0 0.0
    %904 = vmatprep.subr.mxu0 0.0
    %905 = vmatpush1.msra.mxu0 0.0
    %906 = vmatprep.subr.mxu0 0.0
    %907 = vmatpush1.msra.mxu0 0.0
    %908 = vmatprep.subr.mxu0 0.0
    %909 = vmatpush1.msra.mxu0 0.0
    %910 = vmatprep.subr.mxu0 0.0
    %911 = vmatpush1.msra.mxu0 0.0
    %912 = vmatprep.subr.mxu0 0.0
    %913 = vmatpush1.msra.mxu0 0.0
    %914 = vmatprep.subr.mxu0 0.0
    %915 = vmatpush1.msra.mxu0 0.0
    %916 = vmatprep.subr.mxu0 0.0
    %917 = vmatpush1.msra.mxu0 0.0
    %918 = vmatprep.subr.mxu0 0.0
    %919 = vmatpush1.msra.mxu0 0.0
    %920 = vmatprep.mubr.f32.mxu0 0.0
    %921 = vmatmul.mubr.f32.gmra.mrb[0].mxu0 %v854
    %v922 = vpop.f32.mrb[0].mxu0
    %v923 = vadd.f32 0.0, %v922
    %v924 = vpop.f32.mrb[0].mxu0
    %925 = vdwg.mxu0
    %v927 = vrot.slane %v923, 6
    %v929 = vadd.f32 %v366, %v927
    %v930 = vtanh.pop %v929
    %931 = vst.msk [vmem:[#allocation2 + $0x8] sm:$0xc] %vm612, %v930
    %v933 = vrot.slane %v930, 2
    %v934 = vsel %vm95, %v933, 0
    %936 = vmatprep.subr.mxu0 0.0
    %937 = vmatpush1.msra.mxu0 %v453
    %938 = vmatprep.subr.mxu0 0.0
    %939 = vmatpush1.msra.mxu0 %v454
    %940 = vmatprep.subr.mxu0 0.0
    %941 = vmatpush1.msra.mxu0 %v455
    %942 = vmatprep.subr.mxu0 0.0
    %943 = vmatpush1.msra.mxu0 %v456
    %944 = vmatprep.subr.mxu0 0.0
    %945 = vmatpush1.msra.mxu0 0.0
    %946 = vmatprep.subr.mxu0 0.0
    %947 = vmatpush1.msra.mxu0 0.0
    %948 = vmatprep.subr.mxu0 0.0
    %949 = vmatpush1.msra.mxu0 0.0
    %950 = vmatprep.subr.mxu0 0.0
    %951 = vmatpush1.msra.mxu0 0.0
    %952 = vmatprep.subr.mxu0 0.0
    %953 = vmatpush1.msra.mxu0 0.0
    %954 = vmatprep.subr.mxu0 0.0
    %955 = vmatpush1.msra.mxu0 0.0
    %956 = vmatprep.subr.mxu0 0.0
    %957 = vmatpush1.msra.mxu0 0.0
    %958 = vmatprep.subr.mxu0 0.0
    %959 = vmatpush1.msra.mxu0 0.0
    %960 = vmatprep.subr.mxu0 0.0
    %961 = vmatpush1.msra.mxu0 0.0
    %962 = vmatprep.subr.mxu0 0.0
    %963 = vmatpush1.msra.mxu0 0.0
    %964 = vmatprep.subr.mxu0 0.0
    %965 = vmatpush1.msra.mxu0 0.0
    %966 = vmatprep.subr.mxu0 0.0
    %967 = vmatpush1.msra.mxu0 0.0
    %968 = vmatprep.subr.mxu0 0.0
    %969 = vmatpush1.msra.mxu0 0.0
    %970 = vmatprep.subr.mxu0 0.0
    %971 = vmatpush1.msra.mxu0 0.0
    %972 = vmatprep.subr.mxu0 0.0
    %973 = vmatpush1.msra.mxu0 0.0
    %974 = vmatprep.subr.mxu0 0.0
    %975 = vmatpush1.msra.mxu0 0.0
    %976 = vmatprep.subr.mxu0 0.0
    %977 = vmatpush1.msra.mxu0 0.0
    %978 = vmatprep.subr.mxu0 0.0
    %979 = vmatpush1.msra.mxu0 0.0
    %980 = vmatprep.subr.mxu0 0.0
    %981 = vmatpush1.msra.mxu0 0.0
    %982 = vmatprep.subr.mxu0 0.0
    %983 = vmatpush1.msra.mxu0 0.0
    %984 = vmatprep.subr.mxu0 0.0
    %985 = vmatpush1.msra.mxu0 0.0
    %986 = vmatprep.subr.mxu0 0.0
    %987 = vmatpush1.msra.mxu0 0.0
    %988 = vmatprep.subr.mxu0 0.0
    %989 = vmatpush1.msra.mxu0 0.0
    %990 = vmatprep.subr.mxu0 0.0
    %991 = vmatpush1.msra.mxu0 0.0
    %992 = vmatprep.subr.mxu0 0.0
    %993 = vmatpush1.msra.mxu0 0.0
    %994 = vmatprep.subr.mxu0 0.0
    %995 = vmatpush1.msra.mxu0 0.0
    %996 = vmatprep.subr.mxu0 0.0
    %997 = vmatpush1.msra.mxu0 0.0
    %998 = vmatprep.subr.mxu0 0.0
    %999 = vmatpush1.msra.mxu0 0.0
    %1000 = vmatprep.mubr.f32.mxu0 0.0
    %1001 = vmatmul.mubr.f32.gmra.mrb[0].mxu0 %v934
    %v1002 = vpop.f32.mrb[0].mxu0
    %v1003 = vadd.f32 0.0, %v1002
    %v1004 = vpop.f32.mrb[0].mxu0
    %1005 = vdwg.mxu0
    %v1007 = vrot.slane %v1003, 4
    %v1009 = vadd.f32 %v366, %v1007
    %v1010 = vtanh.pop %v1009
    %1011 = vst.msk [vmem:[#allocation2 + $0x8] sm:$0x30] %vm693, %v1010
    %v1013 = vrot.slane %v1010, 4
    %v1014 = vsel %vm95, %v1013, 0
    %1016 = vmatprep.subr.mxu0 0.0
    %1017 = vmatpush1.msra.mxu0 %v453
    %1018 = vmatprep.subr.mxu0 0.0
    %1019 = vmatpush1.msra.mxu0 %v454
    %1020 = vmatprep.subr.mxu0 0.0
    %1021 = vmatpush1.msra.mxu0 %v455
    %1022 = vmatprep.subr.mxu0 0.0
    %1023 = vmatpush1.msra.mxu0 %v456
    %1024 = vmatprep.subr.mxu0 0.0
    %1025 = vmatpush1.msra.mxu0 0.0
    %1026 = vmatprep.subr.mxu0 0.0
    %1027 = vmatpush1.msra.mxu0 0.0
    %1028 = vmatprep.subr.mxu0 0.0
    %1029 = vmatpush1.msra.mxu0 0.0
    %1030 = vmatprep.subr.mxu0 0.0
    %1031 = vmatpush1.msra.mxu0 0.0
    %1032 = vmatprep.subr.mxu0 0.0
    %1033 = vmatpush1.msra.mxu0 0.0
    %1034 = vmatprep.subr.mxu0 0.0
    %1035 = vmatpush1.msra.mxu0 0.0
    %1036 = vmatprep.subr.mxu0 0.0
    %1037 = vmatpush1.msra.mxu0 0.0
    %1038 = vmatprep.subr.mxu0 0.0
    %1039 = vmatpush1.msra.mxu0 0.0
    %1040 = vmatprep.subr.mxu0 0.0
    %1041 = vmatpush1.msra.mxu0 0.0
    %1042 = vmatprep.subr.mxu0 0.0
    %1043 = vmatpush1.msra.mxu0 0.0
    %1044 = vmatprep.subr.mxu0 0.0
    %1045 = vmatpush1.msra.mxu0 0.0
    %1046 = vmatprep.subr.mxu0 0.0
    %1047 = vmatpush1.msra.mxu0 0.0
    %1048 = vmatprep.subr.mxu0 0.0
    %1049 = vmatpush1.msra.mxu0 0.0
    %1050 = vmatprep.subr.mxu0 0.0
    %1051 = vmatpush1.msra.mxu0 0.0
    %1052 = vmatprep.subr.mxu0 0.0
    %1053 = vmatpush1.msra.mxu0 0.0
    %1054 = vmatprep.subr.mxu0 0.0
    %1055 = vmatpush1.msra.mxu0 0.0
    %1056 = vmatprep.subr.mxu0 0.0
    %1057 = vmatpush1.msra.mxu0 0.0
    %1058 = vmatprep.subr.mxu0 0.0
    %1059 = vmatpush1.msra.mxu0 0.0
    %1060 = vmatprep.subr.mxu0 0.0
    %1061 = vmatpush1.msra.mxu0 0.0
    %1062 = vmatprep.subr.mxu0 0.0
    %1063 = vmatpush1.msra.mxu0 0.0
    %1064 = vmatprep.subr.mxu0 0.0
    %1065 = vmatpush1.msra.mxu0 0.0
    %1066 = vmatprep.subr.mxu0 0.0
    %1067 = vmatpush1.msra.mxu0 0.0
    %1068 = vmatprep.subr.mxu0 0.0
    %1069 = vmatpush1.msra.mxu0 0.0
    %1070 = vmatprep.subr.mxu0 0.0
    %1071 = vmatpush1.msra.mxu0 0.0
    %1072 = vmatprep.subr.mxu0 0.0
    %1073 = vmatpush1.msra.mxu0 0.0
    %1074 = vmatprep.subr.mxu0 0.0
    %1075 = vmatpush1.msra.mxu0 0.0
    %1076 = vmatprep.subr.mxu0 0.0
    %1077 = vmatpush1.msra.mxu0 0.0
    %1078 = vmatprep.subr.mxu0 0.0
    %1079 = vmatpush1.msra.mxu0 0.0
    %1080 = vmatprep.mubr.f32.mxu0 0.0
    %1081 = vmatmul.mubr.f32.gmra.mrb[0].mxu0 %v1014
    %v1082 = vpop.f32.mrb[0].mxu0
    %v1083 = vadd.f32 0.0, %v1082
    %v1084 = vpop.f32.mrb[0].mxu0
    %1085 = vdwg.mxu0
    %v1087 = vrot.slane %v1083, 2
    %v1089 = vadd.f32 %v366, %v1087
    %v1090 = vtanh.pop %v1089
    %1091 = vst.msk [vmem:[#allocation2 + $0x8] sm:$0xc0] %vm774, %v1090
    %v1092 = vld [vmem:[#allocation2] sm:$0xff]
    %v1093 = vld [vmem:[#allocation2 + $0x8] sm:$0xff]
    %v1094 = vld [vmem:[%s11] sm:$0xff]
    %v1095 = vld [vmem:[%s11 + $0x8] sm:$0xff]
    %v1096 = vld [vmem:[%s11 + $0x10] sm:$0xff]
    %v1097 = vld [vmem:[%s11 + $0x18] sm:$0xff]
    %v1098 = vld [vmem:[%s12] sm:$0x1]
    %v1100 = vlaneseq
    %v1101 = vshrl.u32 %v1100, 7
    %v1102 = vsub.s32 0, %v1101
    %v1103 = vrot.slane %v1098, %v1102
    %v1106 = vsel %vm95, %v1092, 0
    %v1109 = vsel %vm95, %v1093, 0
    %1111 = vmatprep.subr.mxu0 0.0
    %1112 = vmatpush1.msra.mxu0 %v1094
    %1113 = vmatprep.subr.mxu0 0.0
    %1114 = vmatpush1.msra.mxu0 %v1095
    %1115 = vmatprep.subr.mxu0 0.0
    %1116 = vmatpush1.msra.mxu0 %v1096
    %1117 = vmatprep.subr.mxu0 0.0
    %1118 = vmatpush1.msra.mxu0 %v1097
    %1119 = vmatprep.subr.mxu0 0.0
    %1120 = vmatpush1.msra.mxu0 0.0
    %1121 = vmatprep.subr.mxu0 0.0
    %1122 = vmatpush1.msra.mxu0 0.0
    %1123 = vmatprep.subr.mxu0 0.0
    %1124 = vmatpush1.msra.mxu0 0.0
    %1125 = vmatprep.subr.mxu0 0.0
    %1126 = vmatpush1.msra.mxu0 0.0
    %1127 = vmatprep.subr.mxu0 0.0
    %1128 = vmatpush1.msra.mxu0 0.0
    %1129 = vmatprep.subr.mxu0 0.0
    %1130 = vmatpush1.msra.mxu0 0.0
    %1131 = vmatprep.subr.mxu0 0.0
    %1132 = vmatpush1.msra.mxu0 0.0
    %1133 = vmatprep.subr.mxu0 0.0
    %1134 = vmatpush1.msra.mxu0 0.0
    %1135 = vmatprep.subr.mxu0 0.0
    %1136 = vmatpush1.msra.mxu0 0.0
    %1137 = vmatprep.subr.mxu0 0.0
    %1138 = vmatpush1.msra.mxu0 0.0
    %1139 = vmatprep.subr.mxu0 0.0
    %1140 = vmatpush1.msra.mxu0 0.0
    %1141 = vmatprep.subr.mxu0 0.0
    %1142 = vmatpush1.msra.mxu0 0.0
    %1143 = vmatprep.subr.mxu0 0.0
    %1144 = vmatpush1.msra.mxu0 0.0
    %1145 = vmatprep.subr.mxu0 0.0
    %1146 = vmatpush1.msra.mxu0 0.0
    %1147 = vmatprep.subr.mxu0 0.0
    %1148 = vmatpush1.msra.mxu0 0.0
    %1149 = vmatprep.subr.mxu0 0.0
    %1150 = vmatpush1.msra.mxu0 0.0
    %1151 = vmatprep.subr.mxu0 0.0
    %1152 = vmatpush1.msra.mxu0 0.0
    %1153 = vmatprep.subr.mxu0 0.0
    %1154 = vmatpush1.msra.mxu0 0.0
    %1155 = vmatprep.subr.mxu0 0.0
    %1156 = vmatpush1.msra.mxu0 0.0
    %1157 = vmatprep.subr.mxu0 0.0
    %1158 = vmatpush1.msra.mxu0 0.0
    %1159 = vmatprep.subr.mxu0 0.0
    %1160 = vmatpush1.msra.mxu0 0.0
    %1161 = vmatprep.subr.mxu0 0.0
    %1162 = vmatpush1.msra.mxu0 0.0
    %1163 = vmatprep.subr.mxu0 0.0
    %1164 = vmatpush1.msra.mxu0 0.0
    %1165 = vmatprep.subr.mxu0 0.0
    %1166 = vmatpush1.msra.mxu0 0.0
    %1167 = vmatprep.subr.mxu0 0.0
    %1168 = vmatpush1.msra.mxu0 0.0
    %1169 = vmatprep.subr.mxu0 0.0
    %1170 = vmatpush1.msra.mxu0 0.0
    %1171 = vmatprep.subr.mxu0 0.0
    %1172 = vmatpush1.msra.mxu0 0.0
    %1173 = vmatprep.subr.mxu0 0.0
    %1174 = vmatpush1.msra.mxu0 0.0
    %1175 = vmatprep.mubr.f32.mxu0 0.0
    %1176 = vmatmul.mubr.f32.gmra.mrb[0].mxu0 %v1106
    %v1177 = vpop.f32.mrb[0].mxu0
    %v1178 = vadd.f32 %v1103, %v1177
    %v1179 = vpop.f32.mrb[0].mxu0
    %1180 = vmatprep.mubr.f32.mxu0 0.0
    %1181 = vmatmul.mubr.f32.gmra.mrb[0].mxu0 %v1109
    %v1182 = vpop.f32.mrb[0].mxu0
    %v1183 = vadd.f32 %v1103, %v1182
    %v1184 = vpop.f32.mrb[0].mxu0
    %1185 = vdwg.mxu0
    %vm1186 = vcmask 48128
    %1187 = vst.msk [vmem:[%s13] sm:$0xff] %vm1186, %v1178
    %1188 = vst.msk [vmem:[%s13 + $0x8] sm:$0xff] %vm1186, %v1183
    %1189 = vst.msk [vmem:[#allocation9 - $0x6] sm:$0xc0] %vm774, %v1090
    // Predicated region
    $region66: #{tpu_custom_call.1} parent=1 // pred_check
      _
    $region67: #{tpu_custom_call.1} parent=1 // pred_check_branch
      %1191 = sbr.rel (0) target = $region69
    $region68: #{tpu_custom_call.1} parent=1 // pred_region
      _
    $region69: #{tpu_custom_call.1} parent=1 // pred_fallthru
      _
    // Predicated region
    $region70: #{tpu_custom_call.1} parent=1 // pred_check
      _
    $region71: #{tpu_custom_call.1} parent=1 // pred_check_branch
      %1193 = sbr.rel (0) target = $region73
    $region72: #{tpu_custom_call.1} parent=1 // pred_region
      %s1195 = ssub.s32 32, 32
      %1196 = vsyncadd [#allocation5], %s1195
      %s1198 = sshll.u32 [#allocation9], 4
      %s1199 = int_to_ptr.vmem [resolvable:$true] %s1198
      %1201 = dma.vmem_to_hbm [thread:$0]  %s1199, 32, %s14, [#allocation5]
    $region73: #{tpu_custom_call.1} parent=1 // pred_fallthru
      _
    // Predicated region
    $region74: #{tpu_custom_call.1} parent=1 // pred_check
      _
    $region75: #{tpu_custom_call.1} parent=1 // pred_check_branch
      %1203 = sbr.rel (0) target = $region77
    $region76: #{tpu_custom_call.1} parent=1 // pred_region
      _
    $region77: #{tpu_custom_call.1} parent=1 // pred_fallthru
      _
    // Predicated region
    $region78: #{tpu_custom_call.1} parent=1 // pred_check
      _
    $region79: #{tpu_custom_call.1} parent=1 // pred_check_branch
      %1205 = sbr.rel (0) target = $region81
    $region80: #{tpu_custom_call.1} parent=1 // pred_region
      %1206 = dma.done [#allocation5], 32
    $region81: #{tpu_custom_call.1} parent=1 // pred_fallthru
      _
    %1207 = vsyncpa [#allocation4], 1
    %1208 = vsyncpa [#allocation7], 1
    %1209 = vsyncpa [#allocation5], 1

</llo_original>
